<compile_context>
chip_gen: v6e
topology: v6e:2x2x1
jax: 0.10.0
libtpu: 0.0.40
codegen_flags: <defaults>
</compile_context>

<pallas_src>
import jax
import jax.numpy as jnp
from jax import lax
from jax.experimental import pallas as pl
from jax.experimental.pallas import tpu as pltpu

C = 128  # fixed by the module (BatchNorm2d(128), 128->128 convs)


def _ceb_kernel(x_ref, bn_ref, wgap_ref, w3_ref, o_ref, exp_ref):
    # x_ref:    (1, H, W, C)   f32   one batch element (unpadded)
    # bn_ref:   (8, C)         f32   rows = [s1, b1, s2, b2, s3, b3, 0, 0]
    # wgap_ref: (C, C)         f32   1x1 conv weight, (in, out)
    # w3_ref:   (3, 3*C, C)    bf16  3x3 conv weight, [kh, kw*C + in, out]
    # o_ref:    (1, H, W, C)   f32
    # exp_ref:  (H+2, W, 3*C)  bf16  kw-expanded, zero-bordered operand scratch
    H, W = x_ref.shape[1], x_ref.shape[2]

    # M-tile height (output rows per matmul chunk): largest divisor of H <= 8.
    TH = 1
    for cand in (8, 4, 2):
        if H % cand == 0:
            TH = cand
            break
    n_tiles = H // TH

    bn = bn_ref[...]
    s1, b1 = bn[0:1, :], bn[1:2, :]
    s2, b2 = bn[2:3, :], bn[3:4, :]
    s3, b3 = bn[4:5, :], bn[5:6, :]

    x = x_ref[0]                                          # (H, W, C) f32

    # --- global average pool -> bn -> 1x1 conv -> bn + relu (tiny, f32) ---
    m = jnp.sum(x.reshape(H * W, C), axis=0, keepdims=True) * (1.0 / (H * W))
    m = m * s1 + b1
    g = jnp.dot(m, wgap_ref[...], preferred_element_type=jnp.float32)
    g = jnp.maximum(g * s2 + b2, 0.0)                     # (1, C)

    # --- residual add, broadcast over H, W ---
    featp = x + g.reshape(1, 1, C)                        # (H, W, C) f32

    # --- build kw-expanded bf16 operand in the VMEM scratch ---
    #   exp[r, w, kw*C:(kw+1)*C] = featp[r-1, w+kw-1], zero outside the image.
    # The scratch persists across grid steps, so the zero border rows only
    # need to be written on the first step.
    @pl.when(pl.program_id(0) == 0)
    def _():
        zrow = jnp.zeros((W, 3 * C), jnp.bfloat16)
        exp_ref[0] = zrow                                 # top zero-pad row
        exp_ref[H + 1] = zrow                             # bottom zero-pad row

    zcol = jnp.zeros((H, 1, C), jnp.float32)
    left = jnp.concatenate([zcol, featp[:, :W - 1, :]], axis=1)   # featp[., w-1]
    right = jnp.concatenate([featp[:, 1:, :], zcol], axis=1)      # featp[., w+1]
    exp_ref[pl.ds(1, H), :, pl.ds(0 * C, C)] = left.astype(jnp.bfloat16)
    exp_ref[pl.ds(1, H), :, pl.ds(1 * C, C)] = featp.astype(jnp.bfloat16)
    exp_ref[pl.ds(1, H), :, pl.ds(2 * C, C)] = right.astype(jnp.bfloat16)

    # --- conv_last: 3x3 conv as 3 fused bf16 matmuls (K = 3*C), M-tiled ---
    def mtile(t, carry):
        r0 = pl.multiple_of(t * TH, TH)                   # output-row offset
        acc = jnp.zeros((TH * W, C), jnp.float32)
        for kh in range(3):
            win = exp_ref[pl.ds(r0 + kh, TH), :, :]       # (TH, W, 3C) bf16
            acc = acc + jnp.dot(win.reshape(TH * W, 3 * C), w3_ref[kh],
                                preferred_element_type=jnp.float32)
        out = acc * s3 + b3                               # final bn (no relu)
        o_ref[0, pl.ds(r0, TH), :, :] = out.reshape(TH, W, C).astype(o_ref.dtype)
        return carry

    lax.fori_loop(0, n_tiles, mtile, 0)


def context_embedding_block(x_nhwc, params):
    """x_nhwc: (N, H, W, 128) float32."""
    N, H, W, Cin = x_nhwc.shape
    assert Cin == C
    assert H % 2 == 0 and W % 8 == 0
    wgap, bn_pack, w3 = params
    # VMEM per step: ~1.4 MiB (double-buffered x/out blocks + weights + scratch)
    # -> far below the default scoped limit, so no explicit vmem_limit_bytes.
    return pl.pallas_call(
        _ceb_kernel,
        out_shape=jax.ShapeDtypeStruct((N, H, W, C), x_nhwc.dtype),
        grid_spec=pltpu.PrefetchScalarGridSpec(
            num_scalar_prefetch=0,
            grid=(N,),
            in_specs=[
                pl.BlockSpec((1, H, W, C), lambda n: (n, 0, 0, 0)),
                pl.BlockSpec((8, C), lambda n: (0, 0)),            # packed BN
                pl.BlockSpec((C, C), lambda n: (0, 0)),            # 1x1 weight
                pl.BlockSpec((3, 3 * C, C), lambda n: (0, 0, 0)),  # 3x3 weight
            ],
            out_specs=pl.BlockSpec((1, H, W, C), lambda n: (n, 0, 0, 0)),
            scratch_shapes=[pltpu.VMEM((H + 2, W, 3 * C), jnp.bfloat16)],
        ),
        compiler_params=pltpu.CompilerParams(
            dimension_semantics=("parallel",)),
    )(x_nhwc, bn_pack, wgap, w3)


def make_params(key):
    """Deterministic synthetic parameters (module __init__ shapes), BN folded."""
    keys = jax.random.split(key, 14)

    def bn_fold(kg, kb, km, kv):
        gamma = 1.0 + 0.1 * jax.random.normal(kg, (1, C), jnp.float32)
        beta = 0.1 * jax.random.normal(kb, (1, C), jnp.float32)
        run_mean = 0.1 * jax.random.normal(km, (1, C), jnp.float32)
        run_var = jnp.abs(1.0 + 0.1 * jax.random.normal(kv, (1, C), jnp.float32))
        eps = 1e-5
        scale = gamma / jnp.sqrt(run_var + eps)
        shift = beta - run_mean * scale
        return scale, shift

    s1, b1 = bn_fold(*keys[0:4])    # self.bn
    s2, b2 = bn_fold(*keys[4:8])    # conv_gap.bn
    s3, b3 = bn_fold(*keys[8:12])   # conv_last.bn

    # conv_gap weight: PyTorch (out,in,1,1) -> stored here as (in, out)
    wgap = jax.random.normal(keys[12], (C, C), jnp.float32) * (1.0 / C) ** 0.5
    # conv_last weight: PyTorch (out,in,3,3) -> stored here as (kh, kw, in, out)
    w3 = jax.random.normal(keys[13], (3, 3, C, C), jnp.float32) * (1.0 / (9 * C)) ** 0.5

    bn_pack = jnp.concatenate(
        [s1, b1, s2, b2, s3, b3, jnp.zeros((2, C), jnp.float32)], axis=0)  # (8, C)
    w3_kernel = w3.reshape(3, 3 * C, C).astype(jnp.bfloat16)  # fused-K bf16 layout

    kernel_params = (wgap, bn_pack, w3_kernel)
    ref_params = (wgap, s1, b1, s2, b2, w3, s3, b3)
    return kernel_params, ref_params


def reference(x_nhwc, ref_params):
    """Pure-JAX f32 reference of the same forward pass (correctness check)."""
    wgap, s1, b1, s2, b2, w3, s3, b3 = ref_params
    m = jnp.mean(x_nhwc, axis=(1, 2), keepdims=True)            # (N,1,1,C)
    m = m * s1 + b1
    g = jnp.einsum('nijc,cd->nijd', m, wgap)
    g = jnp.maximum(g * s2 + b2, 0.0)
    feat = g + x_nhwc
    out = lax.conv_general_dilated(
        feat, w3, window_strides=(1, 1), padding='SAME',
        dimension_numbers=('NHWC', 'HWIO', 'NHWC'))
    return out * s3 + b3


if __name__ == "__main__":
    key = jax.random.PRNGKey(0)
    kx, kp = jax.random.split(key)
    N, H, W = 2, 16, 16

    # Input in the module's native NCHW convention, transposed to NHWC for the kernel.
    x_nchw = jax.random.normal(kx, (N, C, H, W), jnp.float32)
    x_nhwc = jnp.transpose(x_nchw, (0, 2, 3, 1))

    kernel_params, ref_params = make_params(kp)

    out = context_embedding_block(x_nhwc, kernel_params)
    out = jax.block_until_ready(out)
    assert out.shape == (N, H, W, C)

    ref = reference(x_nhwc, ref_params)
    # Tolerance accounts for bf16 MXU inputs (f32 accumulation) in the 3x3 conv
    # vs. the all-f32 reference convolution.
    if not bool(jnp.allclose(out, ref, atol=5e-2, rtol=5e-2)):
        max_err = float(jnp.max(jnp.abs(out - ref)))
        raise AssertionError(f"kernel/reference mismatch, max abs err {max_err}")

    print("KERNEL_OK")
</pallas_src>

<mosaic_0001>
module attributes {stable_mosaic.version = 11 : i64} {
  func.func @_ceb_kernel(%arg0: i32, %arg1: memref<1x16x16x128xf32, #tpu.memory_space<vmem>>, %arg2: memref<8x128xf32, #tpu.memory_space<vmem>>, %arg3: memref<128x128xf32, #tpu.memory_space<vmem>>, %arg4: memref<3x384x128xbf16, #tpu.memory_space<vmem>>, %arg5: memref<1x16x16x128xf32, #tpu.memory_space<vmem>>, %arg6: memref<18x16x384xbf16, #tpu.memory_space<vmem>>) attributes {dimension_semantics = [#tpu.dimension_semantics<parallel>], iteration_bounds = array<i64: 2>, scalar_prefetch = 0 : i64, scratch_operands = 1 : i64, tpu.core_type = #tpu.core_type<tc>, window_params = [{transform_indices = @transform_0, window_bounds = array<i64: 1, 16, 16, 128>}, {pipeline_mode = #tpu.pipeline_mode<synchronous>, transform_indices = @transform_1, window_bounds = array<i64: 8, 128>}, {pipeline_mode = #tpu.pipeline_mode<synchronous>, transform_indices = @transform_2, window_bounds = array<i64: 128, 128>}, {pipeline_mode = #tpu.pipeline_mode<synchronous>, transform_indices = @transform_3, window_bounds = array<i64: 3, 384, 128>}, {transform_indices = @transform_4, window_bounds = array<i64: 1, 16, 16, 128>}]} {
    %c0 = arith.constant 0 : index
    %c0_0 = arith.constant 0 : index
    %0 = vector.load %arg2[%c0, %c0_0] : memref<8x128xf32, #tpu.memory_space<vmem>>, vector<8x128xf32>
    %1 = vector.extract_strided_slice %0 {offsets = [0, 0], sizes = [1, 128], strides = [1, 1]} : vector<8x128xf32> to vector<1x128xf32>
    %2 = vector.extract_strided_slice %0 {offsets = [1, 0], sizes = [1, 128], strides = [1, 1]} : vector<8x128xf32> to vector<1x128xf32>
    %3 = vector.extract_strided_slice %0 {offsets = [2, 0], sizes = [1, 128], strides = [1, 1]} : vector<8x128xf32> to vector<1x128xf32>
    %4 = vector.extract_strided_slice %0 {offsets = [3, 0], sizes = [1, 128], strides = [1, 1]} : vector<8x128xf32> to vector<1x128xf32>
    %5 = vector.extract_strided_slice %0 {offsets = [4, 0], sizes = [1, 128], strides = [1, 1]} : vector<8x128xf32> to vector<1x128xf32>
    %6 = vector.extract_strided_slice %0 {offsets = [5, 0], sizes = [1, 128], strides = [1, 1]} : vector<8x128xf32> to vector<1x128xf32>
    %c0_1 = arith.constant 0 : index
    %c0_2 = arith.constant 0 : index
    %c0_3 = arith.constant 0 : index
    %c0_4 = arith.constant 0 : index
    %7 = vector.load %arg1[%c0_1, %c0_2, %c0_3, %c0_4] : memref<1x16x16x128xf32, #tpu.memory_space<vmem>>, vector<1x16x16x128xf32>
    %8 = vector.shape_cast %7 : vector<1x16x16x128xf32> to vector<16x16x128xf32>
    %9 = vector.shape_cast %8 : vector<16x16x128xf32> to vector<256x128xf32>
    %cst = arith.constant dense<0.000000e+00> : vector<128xf32>
    %10 = vector.multi_reduction <add>, %9, %cst [0] : vector<256x128xf32> to vector<128xf32>
    %11 = vector.shape_cast %10 : vector<128xf32> to vector<1x128xf32>
    %cst_5 = arith.constant 3.906250e-03 : f32
    %12 = vector.broadcast %cst_5 : f32 to vector<1x128xf32>
    %13 = arith.mulf %11, %12 : vector<1x128xf32>
    %14 = arith.mulf %13, %1 : vector<1x128xf32>
    %15 = arith.addf %14, %2 : vector<1x128xf32>
    %c0_6 = arith.constant 0 : index
    %c0_7 = arith.constant 0 : index
    %16 = vector.load %arg3[%c0_6, %c0_7] : memref<128x128xf32, #tpu.memory_space<vmem>>, vector<128x128xf32>
    %cst_8 = arith.constant dense<0.000000e+00> : vector<1x128xf32>
    %17 = tpu.matmul %15, %16, %cst_8 {dimension_numbers = #tpu.dot_dimension_numbers<[1], [0], [0], [1], [0, 0, 1, 1], [], []>} : vector<1x128xf32>, vector<128x128xf32>, vector<1x128xf32> -> vector<1x128xf32>
    %18 = arith.mulf %17, %3 : vector<1x128xf32>
    %19 = arith.addf %18, %4 : vector<1x128xf32>
    %cst_9 = arith.constant 0.000000e+00 : f32
    %20 = vector.broadcast %cst_9 : f32 to vector<1x128xf32>
    %21 = arith.maximumf %19, %20 : vector<1x128xf32>
    %22 = vector.shape_cast %21 : vector<1x128xf32> to vector<1x1x128xf32>
    %23 = vector.broadcast %22 : vector<1x1x128xf32> to vector<16x16x128xf32>
    %24 = arith.addf %8, %23 : vector<16x16x128xf32>
    %c0_i32 = arith.constant 0 : i32
    %25 = arith.cmpi eq, %arg0, %c0_i32 : i32
    %26 = arith.extui %25 : i1 to i32
    %c0_i32_10 = arith.constant 0 : i32
    %27 = arith.cmpi ne, %26, %c0_i32_10 : i32
    scf.if %27 {
      %cst_20 = arith.constant 0.000000e+00 : bf16
      %40 = vector.broadcast %cst_20 : bf16 to vector<16x384xbf16>
      %c0_21 = arith.constant 0 : index
      %c0_22 = arith.constant 0 : index
      %c0_23 = arith.constant 0 : index
      %41 = vector.load %arg6[%c0_21, %c0_22, %c0_23] : memref<18x16x384xbf16, #tpu.memory_space<vmem>>, vector<1x16x384xbf16>
      %42 = vector.shape_cast %41 : vector<1x16x384xbf16> to vector<16x384xbf16>
      %43 = vector.shape_cast %40 : vector<16x384xbf16> to vector<1x16x384xbf16>
      tpu.vector_store %arg6[%c0_21, %c0_22, %c0_23], %43 {strides = array<i32>} : memref<18x16x384xbf16, #tpu.memory_space<vmem>>, vector<1x16x384xbf16>,
      %c17 = arith.constant 17 : index
      %c0_24 = arith.constant 0 : index
      %c0_25 = arith.constant 0 : index
      %44 = vector.load %arg6[%c17, %c0_24, %c0_25] : memref<18x16x384xbf16, #tpu.memory_space<vmem>>, vector<1x16x384xbf16>
      %45 = vector.shape_cast %44 : vector<1x16x384xbf16> to vector<16x384xbf16>
      %46 = vector.shape_cast %40 : vector<16x384xbf16> to vector<1x16x384xbf16>
      tpu.vector_store %arg6[%c17, %c0_24, %c0_25], %46 {strides = array<i32>} : memref<18x16x384xbf16, #tpu.memory_space<vmem>>, vector<1x16x384xbf16>,
    } else {
    }
    %cst_11 = arith.constant 0.000000e+00 : f32
    %28 = vector.broadcast %cst_11 : f32 to vector<16x1x128xf32>
    %29 = vector.extract_strided_slice %24 {offsets = [0, 0, 0], sizes = [16, 15, 128], strides = [1, 1, 1]} : vector<16x16x128xf32> to vector<16x15x128xf32>
    %30 = tpu.concatenate %28, %29 in 1 : vector<16x1x128xf32>, vector<16x15x128xf32> -> vector<16x16x128xf32>
    %31 = vector.extract_strided_slice %24 {offsets = [0, 1, 0], sizes = [16, 15, 128], strides = [1, 1, 1]} : vector<16x16x128xf32> to vector<16x15x128xf32>
    %32 = tpu.concatenate %31, %28 in 1 : vector<16x15x128xf32>, vector<16x1x128xf32> -> vector<16x16x128xf32>
    %33 = arith.truncf %30 : vector<16x16x128xf32> to vector<16x16x128xbf16>
    %c1 = arith.constant 1 : index
    %c0_12 = arith.constant 0 : index
    %c0_13 = arith.constant 0 : index
    %34 = vector.load %arg6[%c1, %c0_12, %c0_13] : memref<18x16x384xbf16, #tpu.memory_space<vmem>>, vector<16x16x128xbf16>
    tpu.vector_store %arg6[%c1, %c0_12, %c0_13], %33 {strides = array<i32>} : memref<18x16x384xbf16, #tpu.memory_space<vmem>>, vector<16x16x128xbf16>,
    %35 = arith.truncf %24 : vector<16x16x128xf32> to vector<16x16x128xbf16>
    %c1_14 = arith.constant 1 : index
    %c0_15 = arith.constant 0 : index
    %c128 = arith.constant 128 : index
    %36 = vector.load %arg6[%c1_14, %c0_15, %c128] : memref<18x16x384xbf16, #tpu.memory_space<vmem>>, vector<16x16x128xbf16>
    tpu.vector_store %arg6[%c1_14, %c0_15, %c128], %35 {strides = array<i32>} : memref<18x16x384xbf16, #tpu.memory_space<vmem>>, vector<16x16x128xbf16>,
    %37 = arith.truncf %32 : vector<16x16x128xf32> to vector<16x16x128xbf16>
    %c1_16 = arith.constant 1 : index
    %c0_17 = arith.constant 0 : index
    %c256 = arith.constant 256 : index
    %38 = vector.load %arg6[%c1_16, %c0_17, %c256] : memref<18x16x384xbf16, #tpu.memory_space<vmem>>, vector<16x16x128xbf16>
    tpu.vector_store %arg6[%c1_16, %c0_17, %c256], %37 {strides = array<i32>} : memref<18x16x384xbf16, #tpu.memory_space<vmem>>, vector<16x16x128xbf16>,
    %c0_i32_18 = arith.constant 0 : i32
    %c2_i32 = arith.constant 2 : i32
    %39 = arith.addi %c0_i32_18, %c2_i32 : i32
    %c1_i32 = arith.constant 1 : i32
    scf.for %arg7 = %c0_i32_18 to %39 step %c1_i32  : i32 {
      %c8_i32 = arith.constant 8 : i32
      %40 = arith.muli %arg7, %c8_i32 : i32
      %41 = tpu.assume_multiple %40, 8 : i32
      %cst_20 = arith.constant 0.000000e+00 : f32
      %42 = vector.broadcast %cst_20 : f32 to vector<128x128xf32>
      %c0_i32_21 = arith.constant 0 : i32
      %43 = arith.addi %41, %c0_i32_21 : i32
      %44 = arith.index_cast %43 : i32 to index
      %c0_22 = arith.constant 0 : index
      %c0_23 = arith.constant 0 : index
      %45 = vector.load %arg6[%44, %c0_22, %c0_23] : memref<18x16x384xbf16, #tpu.memory_space<vmem>>, vector<8x16x384xbf16>
      %46 = vector.shape_cast %45 : vector<8x16x384xbf16> to vector<128x384xbf16>
      %c0_24 = arith.constant 0 : index
      %c0_25 = arith.constant 0 : index
      %c0_26 = arith.constant 0 : index
      %47 = vector.load %arg4[%c0_24, %c0_25, %c0_26] : memref<3x384x128xbf16, #tpu.memory_space<vmem>>, vector<1x384x128xbf16>
      %48 = vector.shape_cast %47 : vector<1x384x128xbf16> to vector<384x128xbf16>
      %cst_27 = arith.constant dense<0.000000e+00> : vector<128x128xf32>
      %49 = tpu.matmul %46, %48, %cst_27 {dimension_numbers = #tpu.dot_dimension_numbers<[1], [0], [0], [1], [0, 0, 1, 1], [], []>} : vector<128x384xbf16>, vector<384x128xbf16>, vector<128x128xf32> -> vector<128x128xf32>
      %50 = arith.addf %42, %49 : vector<128x128xf32>
      %c1_i32_28 = arith.constant 1 : i32
      %51 = arith.addi %41, %c1_i32_28 : i32
      %52 = arith.index_cast %51 : i32 to index
      %c0_29 = arith.constant 0 : index
      %c0_30 = arith.constant 0 : index
      %53 = vector.load %arg6[%52, %c0_29, %c0_30] : memref<18x16x384xbf16, #tpu.memory_space<vmem>>, vector<8x16x384xbf16>
      %54 = vector.shape_cast %53 : vector<8x16x384xbf16> to vector<128x384xbf16>
      %c1_31 = arith.constant 1 : index
      %c0_32 = arith.constant 0 : index
      %c0_33 = arith.constant 0 : index
      %55 = vector.load %arg4[%c1_31, %c0_32, %c0_33] : memref<3x384x128xbf16, #tpu.memory_space<vmem>>, vector<1x384x128xbf16>
      %56 = vector.shape_cast %55 : vector<1x384x128xbf16> to vector<384x128xbf16>
      %cst_34 = arith.constant dense<0.000000e+00> : vector<128x128xf32>
      %57 = tpu.matmul %54, %56, %cst_34 {dimension_numbers = #tpu.dot_dimension_numbers<[1], [0], [0], [1], [0, 0, 1, 1], [], []>} : vector<128x384xbf16>, vector<384x128xbf16>, vector<128x128xf32> -> vector<128x128xf32>
      %58 = arith.addf %50, %57 : vector<128x128xf32>
      %c2_i32_35 = arith.constant 2 : i32
      %59 = arith.addi %41, %c2_i32_35 : i32
      %60 = arith.index_cast %59 : i32 to index
      %c0_36 = arith.constant 0 : index
      %c0_37 = arith.constant 0 : index
      %61 = vector.load %arg6[%60, %c0_36, %c0_37] : memref<18x16x384xbf16, #tpu.memory_space<vmem>>, vector<8x16x384xbf16>
      %62 = vector.shape_cast %61 : vector<8x16x384xbf16> to vector<128x384xbf16>
      %c2 = arith.constant 2 : index
      %c0_38 = arith.constant 0 : index
      %c0_39 = arith.constant 0 : index
      %63 = vector.load %arg4[%c2, %c0_38, %c0_39] : memref<3x384x128xbf16, #tpu.memory_space<vmem>>, vector<1x384x128xbf16>
      %64 = vector.shape_cast %63 : vector<1x384x128xbf16> to vector<384x128xbf16>
      %cst_40 = arith.constant dense<0.000000e+00> : vector<128x128xf32>
      %65 = tpu.matmul %62, %64, %cst_40 {dimension_numbers = #tpu.dot_dimension_numbers<[1], [0], [0], [1], [0, 0, 1, 1], [], []>} : vector<128x384xbf16>, vector<384x128xbf16>, vector<128x128xf32> -> vector<128x128xf32>
      %66 = arith.addf %58, %65 : vector<128x128xf32>
      %67 = vector.broadcast %5 : vector<1x128xf32> to vector<128x128xf32>
      %68 = arith.mulf %66, %67 : vector<128x128xf32>
      %69 = vector.broadcast %6 : vector<1x128xf32> to vector<128x128xf32>
      %70 = arith.addf %68, %69 : vector<128x128xf32>
      %71 = vector.shape_cast %70 : vector<128x128xf32> to vector<8x16x128xf32>
      %c0_41 = arith.constant 0 : index
      %72 = arith.index_cast %41 : i32 to index
      %c0_42 = arith.constant 0 : index
      %c0_43 = arith.constant 0 : index
      %73 = vector.load %arg5[%c0_41, %72, %c0_42, %c0_43] : memref<1x16x16x128xf32, #tpu.memory_space<vmem>>, vector<1x8x16x128xf32>
      %74 = vector.shape_cast %73 : vector<1x8x16x128xf32> to vector<8x16x128xf32>
      %75 = vector.shape_cast %71 : vector<8x16x128xf32> to vector<1x8x16x128xf32>
      tpu.vector_store %arg5[%c0_41, %72, %c0_42, %c0_43], %75 {strides = array<i32>} : memref<1x16x16x128xf32, #tpu.memory_space<vmem>>, vector<1x8x16x128xf32>,
    }
    %c2_i32_19 = arith.constant 2 : i32
    return
  }
  func.func @transform_0(%arg0: i32) -> (i32, i32, i32, i32) {
    %c0_i32 = arith.constant 0 : i32
    %c0_i32_0 = arith.constant 0 : i32
    %c0_i32_1 = arith.constant 0 : i32
    %c0_i32_2 = arith.constant 0 : i32
    return %arg0, %c0_i32, %c0_i32_0, %c0_i32_1 : i32, i32, i32, i32
  }
  func.func @transform_1(%arg0: i32) -> (i32, i32) {
    %c0_i32 = arith.constant 0 : i32
    %c0_i32_0 = arith.constant 0 : i32
    %c0_i32_1 = arith.constant 0 : i32
    return %c0_i32, %c0_i32_0 : i32, i32
  }
  func.func @transform_2(%arg0: i32) -> (i32, i32) {
    %c0_i32 = arith.constant 0 : i32
    %c0_i32_0 = arith.constant 0 : i32
    %c0_i32_1 = arith.constant 0 : i32
    return %c0_i32, %c0_i32_0 : i32, i32
  }
  func.func @transform_3(%arg0: i32) -> (i32, i32, i32) {
    %c0_i32 = arith.constant 0 : i32
    %c0_i32_0 = arith.constant 0 : i32
    %c0_i32_1 = arith.constant 0 : i32
    %c0_i32_2 = arith.constant 0 : i32
    return %c0_i32, %c0_i32_0, %c0_i32_1 : i32, i32, i32
  }
  func.func @transform_4(%arg0: i32) -> (i32, i32, i32, i32) {
    %c0_i32 = arith.constant 0 : i32
    %c0_i32_0 = arith.constant 0 : i32
    %c0_i32_1 = arith.constant 0 : i32
    %c0_i32_2 = arith.constant 0 : i32
    return %arg0, %c0_i32, %c0_i32_0, %c0_i32_1 : i32, i32, i32, i32
  }
}

</mosaic_0001>

<llo_original>
// kernel: tpu_custom_call.1
$region0: #{tpu_custom_call.1}
  #allocation0 [shape = 'u32[]', space=smem, size = 0x4, offset = 0x4, fixed_abs, tag = 'smem constant byte address 0x4 - core index']
  #allocation1 [shape = 'u32[144,128]{1,0:T(1,128)}', space=vmem, size = 0x12000, scoped, tag = 'internal scratch']
  #allocation2 [shape = 'bf16[18,16,384]{2,1,0:T(8,128)(2,1)}', space=vmem, size = 0x36000, scoped, tag = 'scratch operand']
  %s0 = inlined_call_operand.hbm [shape: f32[2,16,16,128], index: 0, kind: input, shape index: {}]
  %s1 = inlined_call_operand.hbm [shape: f32[8,128], index: 1, kind: input, shape index: {}]
  %s2 = inlined_call_operand.hbm [shape: f32[128,128], index: 2, kind: input, shape index: {}]
  %s3 = inlined_call_operand.hbm [shape: bf16[3,384,128], index: 3, kind: input, shape index: {}]
  %s4 = inlined_call_operand.hbm [shape: f32[2,16,16,128], index: 4, kind: output, shape index: {}]
  %s5 = sld [smem:[#allocation0]]
  $region76: #{tpu_custom_call.1} parent=0
    _
  %s7 = ssub.s32 1, %s5
  %s8 = scalar_select 0, %s7, %s5
  $region1: #{tpu_custom_call.1} parent=0
    #allocation3 [shape = 'u8[262144]{0}', space=vmem, size = 0x40000, scoped, tag = 'input window, operand 0']
    #allocation4 [shape = 's32[2]{0}', space=sflag, size = 0x8, scoped, tag = 'scoped memory for tpu_custom_call.1']
    #allocation5 [shape = 's32[2]{0}', space=sflag, size = 0x8, scoped, tag = 'scoped memory for tpu_custom_call.1']
    #allocation6 [shape = 'u8[4096]{0}', space=vmem, size = 0x1000, scoped, tag = 'input window, operand 1, single buffered']
    #allocation7 [shape = 's32[1]{0}', space=sflag, size = 0x4, scoped, tag = 'scoped memory for tpu_custom_call.1']
    #allocation8 [shape = 'u8[65536]{0}', space=vmem, size = 0x10000, scoped, tag = 'input window, operand 2, single buffered']
    #allocation9 [shape = 'u8[294912]{0}', space=vmem, size = 0x48000, scoped, tag = 'input window, operand 3, single buffered']
    #allocation10 [shape = 's32[1]{0}', space=sflag, size = 0x4, scoped, tag = 'scoped memory for tpu_custom_call.1']
    #allocation11 [shape = 'u8[262144]{0}', space=vmem, size = 0x40000, scoped, tag = 'output window, operand 0']
    %9 = vsyncpa [#allocation4], 0
    %s10 = scalar_lea.sflag [#allocation4], 1
    %11 = vsyncpa %s10, 0
    %12 = vsyncpa [#allocation7], 0
    %13 = vsyncpa [#allocation10], 0
    %14 = vsyncpa [#allocation5], 0
    %s15 = scalar_lea.sflag [#allocation5], 1
    %16 = vsyncpa %s15, 0
    loop: start=0, step=1, limit=4
    $region2: #{tpu_custom_call.1} parent=1 // loop_pre_header
      _
    $region3: #{tpu_custom_call.1} parent=1 // loop_header
      %s18 = sphi 0, %s22
      %p19 = scmp.ge.s32.totalorder %s18, 4
      %s28 = sphi 0, %s30
      %s31 = sphi 0, %s28
      %s32 = sphi 0, %s31
      %s48 = sphi 0, %s32
      %s52 = sphi 0, %s52
      %s54 = sphi 0, %s52
      %s55 = sphi 0, %s54
      %s69 = sphi 0, %s55
      %s73 = sphi 0, %s73
      %s75 = sphi 0, %s73
      %s76 = sphi 0, %s75
      %s90 = sphi 0, %s76
      %s94 = sphi 0, %s94
      %s96 = sphi 0, %s94
      %s97 = sphi 0, %s96
      %s111 = sphi 0, %s97
      %s117 = sphi 0, %s119
      %s120 = sphi 0, %s117
      %s121 = sphi 0, %s120
      %s137 = sphi 0, %s121
    $region4: #{tpu_custom_call.1} parent=1 // loop_header_branch
      %21 = sbr.rel (%p19) target = $region8
    $region5: #{tpu_custom_call.1} parent=1 // loop_body
      %s23 = ssub.s32 %s18, 1
      %s24 = ssub.s32 %s18, 2
      %s25 = sadd.s32 %s18, 1
      %s26 = ssub.s32 %s18, %s25
      %p27 = scmp.eq.s32.totalorder %s26, 0
      %s29 = sadd.s32 %s28, 1
      %s30 = scalar_select %p27, %s28, %s29
      %p33 = pneg %p27
      %p34 = scmp.eq.s32.totalorder %s18, 1
      %p35 = por %p33, %p34
      %p36 = scmp.ne.s32.totalorder %s28, %s31
      %p37 = scmp.eq.s32.totalorder %s18, 0
      %p38 = por %p36, %p37
      %p39 = scmp.ne.s32.totalorder %s28, %s31
      %p40 = scmp.eq.s32.totalorder %s23, 1
      %p41 = por %p39, %p40
      %p42 = scmp.ne.s32.totalorder %s31, %s32
      %p43 = scmp.eq.s32.totalorder %s23, 0
      %p44 = por %p42, %p43
      %p45 = scmp.ne.s32.totalorder %s31, %s32
      %p46 = scmp.eq.s32.totalorder %s24, 1
      %p47 = por %p45, %p46
      %p49 = scmp.ne.s32.totalorder %s32, %s48
      %p50 = scmp.eq.s32.totalorder %s24, 0
      %p51 = por %p49, %p50
      %s53 = sadd.s32 %s52, 1
      %p56 = scmp.eq.s32.totalorder %s18, 1
      %p57 = scmp.ne.s32.totalorder %s52, %s54
      %p58 = scmp.eq.s32.totalorder %s18, 0
      %p59 = por %p57, %p58
      %p60 = scmp.ne.s32.totalorder %s52, %s54
      %p61 = scmp.eq.s32.totalorder %s23, 1
      %p62 = por %p60, %p61
      %p63 = scmp.ne.s32.totalorder %s54, %s55
      %p64 = scmp.eq.s32.totalorder %s23, 0
      %p65 = por %p63, %p64
      %p66 = scmp.ne.s32.totalorder %s54, %s55
      %p67 = scmp.eq.s32.totalorder %s24, 1
      %p68 = por %p66, %p67
      %p70 = scmp.ne.s32.totalorder %s55, %s69
      %p71 = scmp.eq.s32.totalorder %s24, 0
      %p72 = por %p70, %p71
      %s74 = sadd.s32 %s73, 1
      %p77 = scmp.eq.s32.totalorder %s18, 1
      %p78 = scmp.ne.s32.totalorder %s73, %s75
      %p79 = scmp.eq.s32.totalorder %s18, 0
      %p80 = por %p78, %p79
      %p81 = scmp.ne.s32.totalorder %s73, %s75
      %p82 = scmp.eq.s32.totalorder %s23, 1
      %p83 = por %p81, %p82
      %p84 = scmp.ne.s32.totalorder %s75, %s76
      %p85 = scmp.eq.s32.totalorder %s23, 0
      %p86 = por %p84, %p85
      %p87 = scmp.ne.s32.totalorder %s75, %s76
      %p88 = scmp.eq.s32.totalorder %s24, 1
      %p89 = por %p87, %p88
      %p91 = scmp.ne.s32.totalorder %s76, %s90
      %p92 = scmp.eq.s32.totalorder %s24, 0
      %p93 = por %p91, %p92
      %s95 = sadd.s32 %s94, 1
      %p98 = scmp.eq.s32.totalorder %s18, 1
      %p99 = scmp.ne.s32.totalorder %s94, %s96
      %p100 = scmp.eq.s32.totalorder %s18, 0
      %p101 = por %p99, %p100
      %p102 = scmp.ne.s32.totalorder %s94, %s96
      %p103 = scmp.eq.s32.totalorder %s23, 1
      %p104 = por %p102, %p103
      %p105 = scmp.ne.s32.totalorder %s96, %s97
      %p106 = scmp.eq.s32.totalorder %s23, 0
      %p107 = por %p105, %p106
      %p108 = scmp.ne.s32.totalorder %s96, %s97
      %p109 = scmp.eq.s32.totalorder %s24, 1
      %p110 = por %p108, %p109
      %p112 = scmp.ne.s32.totalorder %s97, %s111
      %p113 = scmp.eq.s32.totalorder %s24, 0
      %p114 = por %p112, %p113
      %s115 = ssub.s32 %s18, %s25
      %p116 = scmp.eq.s32.totalorder %s115, 0
      %s118 = sadd.s32 %s117, 1
      %s119 = scalar_select %p116, %s117, %s118
      %p122 = pneg %p116
      %p123 = scmp.eq.s32.totalorder %s18, 1
      %p124 = por %p122, %p123
      %p125 = scmp.ne.s32.totalorder %s117, %s120
      %p126 = scmp.eq.s32.totalorder %s18, 0
      %p127 = por %p125, %p126
      %p128 = scmp.ne.s32.totalorder %s117, %s120
      %p129 = scmp.eq.s32.totalorder %s23, 1
      %p130 = por %p128, %p129
      %p131 = scmp.ne.s32.totalorder %s120, %s121
      %p132 = scmp.eq.s32.totalorder %s23, 0
      %p133 = por %p131, %p132
      %p134 = scmp.ne.s32.totalorder %s120, %s121
      %p135 = scmp.eq.s32.totalorder %s24, 1
      %p136 = por %p134, %p135
      %p138 = scmp.ne.s32.totalorder %s121, %s137
      %p139 = scmp.eq.s32.totalorder %s24, 0
      %p140 = por %p138, %p139
      %p141 = scmp.le.s32.totalorder 1, %s18
      %p142 = scmp.lt.s32.totalorder %s18, 3
      %p143 = pnand %p141, %p142
      %p144 = pneg %p143
      // Predicated region
      $region9: #{tpu_custom_call.1} parent=5 // pred_check
        _
      $region10: #{tpu_custom_call.1} parent=5 // pred_check_branch
        %146 = sbr.rel (%p143) target = $region12
      $region11: #{tpu_custom_call.1} parent=5 // pred_region
        %s147 = ssub.s32 %s18, 1
        // Predicated region
        $region13: #{tpu_custom_call.1} parent=11 // pred_check
          %p148 = pneg %p65
        $region14: #{tpu_custom_call.1} parent=11 // pred_check_branch
          %150 = sbr.rel (%p148) target = $region16
        $region15: #{tpu_custom_call.1} parent=11 // pred_region
          %s152 = ssub.s32 128, 128
          %153 = vsyncadd [#allocation7], %s152
          %s155 = sshll.u32 [#allocation6], 4
          %s156 = int_to_ptr.vmem [resolvable:$true] %s155
          %158 = dma.hbm_to_vmem [thread:$0]  %s1, 128, %s156, [#allocation7]
        $region16: #{tpu_custom_call.1} parent=11 // pred_fallthru
          _
        // Predicated region
        $region17: #{tpu_custom_call.1} parent=11 // pred_check
          %p159 = pneg %p86
        $region18: #{tpu_custom_call.1} parent=11 // pred_check_branch
          %161 = sbr.rel (%p159) target = $region20
        $region19: #{tpu_custom_call.1} parent=11 // pred_region
          %s163 = ssub.s32 2048, 2048
          %164 = vsyncadd [#allocation7], %s163
          %s165 = sshll.u32 [#allocation8], 4
          %s166 = int_to_ptr.vmem [resolvable:$true] %s165
          %171 = dma.hbm_to_vmem [thread:$0]  %s2, 2048, %s166, [#allocation7], 128, 128, 8
        $region20: #{tpu_custom_call.1} parent=11 // pred_fallthru
          _
        // Predicated region
        $region21: #{tpu_custom_call.1} parent=11 // pred_check
          %p172 = pneg %p107
        $region22: #{tpu_custom_call.1} parent=11 // pred_check_branch
          %174 = sbr.rel (%p172) target = $region24
        $region23: #{tpu_custom_call.1} parent=11 // pred_region
          %s176 = ssub.s32 9216, 9216
          %177 = vsyncadd [#allocation10], %s176
          %s178 = sshll.u32 [#allocation9], 4
          %s179 = int_to_ptr.vmem [resolvable:$true] %s178
          %184 = dma.hbm_to_vmem [thread:$0]  %s3, 9216, %s179, [#allocation10], 64, 64, 4
        $region24: #{tpu_custom_call.1} parent=11 // pred_fallthru
          _
      $region12: #{tpu_custom_call.1} parent=5 // pred_fallthru
        _
      %p185 = scmp.lt.s32.totalorder %s18, 2
      // Predicated region
      $region25: #{tpu_custom_call.1} parent=5 // pred_check
        %p186 = pneg %p185
      $region26: #{tpu_custom_call.1} parent=5 // pred_check_branch
        %188 = sbr.rel (%p186) target = $region28
      $region27: #{tpu_custom_call.1} parent=5 // pred_region
        // Predicated region
        $region29: #{tpu_custom_call.1} parent=27 // pred_check
          %p189 = pneg %p38
        $region30: #{tpu_custom_call.1} parent=27 // pred_check_branch
          %191 = sbr.rel (%p189) target = $region32
        $region31: #{tpu_custom_call.1} parent=27 // pred_region
          %s192 = sand.u32 %s28, 1
          %s193 = scalar_lea.sflag [#allocation4], %s192
          %s194 = sand.u32 %s28, 1
          %s195 = smul.addr %s194, 256
          %s196 = scalar_lea.vmem [#allocation3], %s195
          %s198 = ssub.s32 4096, 4096
          %199 = vsyncadd %s193, %s198
          %s200 = smul.addr %s18, 32
          %s201 = smul.addr %s200, 128
          %s202 = scalar_lea.hbm %s0, %s201
          %s203 = sshll.u32 %s196, 4
          %s204 = int_to_ptr.vmem [resolvable:$true] %s203
          %209 = dma.hbm_to_vmem [thread:$0]  %s202, 4096, %s204, %s193, 128, 128, 8
        $region32: #{tpu_custom_call.1} parent=27 // pred_fallthru
          _
      $region28: #{tpu_custom_call.1} parent=5 // pred_fallthru
        _
      %p210 = scmp.le.s32.totalorder 1, %s18
      %p211 = scmp.lt.s32.totalorder %s18, 3
      %p212 = pnand %p210, %p211
      %p213 = pneg %p212
      // Predicated region
      $region33: #{tpu_custom_call.1} parent=5 // pred_check
        _
      $region34: #{tpu_custom_call.1} parent=5 // pred_check_branch
        %215 = sbr.rel (%p212) target = $region36
      $region35: #{tpu_custom_call.1} parent=5 // pred_region
        %s216 = ssub.s32 %s18, 1
        %s217 = sand.u32 %s31, 1
        %s218 = scalar_lea.sflag [#allocation4], %s217
        %s219 = sand.u32 %s31, 1
        %s220 = smul.addr %s219, 256
        %s221 = scalar_lea.vmem [#allocation3], %s220
        // Predicated region
        $region37: #{tpu_custom_call.1} parent=35 // pred_check
          %p222 = pneg %p44
        $region38: #{tpu_custom_call.1} parent=35 // pred_check_branch
          %224 = sbr.rel (%p222) target = $region40
        $region39: #{tpu_custom_call.1} parent=35 // pred_region
          %225 = dma.done %s218, 4096
        $region40: #{tpu_custom_call.1} parent=35 // pred_fallthru
          _
        // Predicated region
        $region41: #{tpu_custom_call.1} parent=35 // pred_check
          %p226 = pneg %p65
        $region42: #{tpu_custom_call.1} parent=35 // pred_check_branch
          %228 = sbr.rel (%p226) target = $region44
        $region43: #{tpu_custom_call.1} parent=35 // pred_region
          %229 = dma.done [#allocation7], 128
        $region44: #{tpu_custom_call.1} parent=35 // pred_fallthru
          _
        // Predicated region
        $region45: #{tpu_custom_call.1} parent=35 // pred_check
          %p230 = pneg %p86
        $region46: #{tpu_custom_call.1} parent=35 // pred_check_branch
          %232 = sbr.rel (%p230) target = $region48
        $region47: #{tpu_custom_call.1} parent=35 // pred_region
          %233 = dma.done [#allocation7], 2048
        $region48: #{tpu_custom_call.1} parent=35 // pred_fallthru
          _
        // Predicated region
        $region49: #{tpu_custom_call.1} parent=35 // pred_check
          %p234 = pneg %p107
        $region50: #{tpu_custom_call.1} parent=35 // pred_check_branch
          %236 = sbr.rel (%p234) target = $region52
        $region51: #{tpu_custom_call.1} parent=35 // pred_region
          %237 = dma.done [#allocation10], 9216
        $region52: #{tpu_custom_call.1} parent=35 // pred_fallthru
          _
        %s238 = sand.u32 %s31, 1
        %s239 = scalar_lea.sflag [#allocation4], %s238
        %s240 = sand.u32 %s31, 1
        %s241 = smul.addr %s240, 256
        %s242 = scalar_lea.vmem [#allocation3], %s241
        %p243 = pneg %p44
        %p244 = pneg %p41
        %p245 = pneg %p65
        %p246 = pneg %p62
        %p247 = pneg %p86
        %p248 = pneg %p83
        %p249 = pneg %p107
        %p250 = pneg %p104
        %p251 = pneg %p133
        %p252 = pneg %p130
        %s253 = sand.u32 %s120, 1
        %s254 = scalar_lea.sflag [#allocation5], %s253
        %s255 = sand.u32 %s120, 1
        %s256 = smul.addr %s255, 256
        %s257 = scalar_lea.vmem [#allocation11], %s256
        %v259 = vld [vmem:[#allocation6] sm:$0xff]
        %v260 = vld [vmem:[%s221] sm:$0xff]
        %v261 = vld [vmem:[%s221 + $0x8] sm:$0xff]
        %v262 = vld [vmem:[%s221 + $0x10] sm:$0xff]
        %v263 = vld [vmem:[%s221 + $0x18] sm:$0xff]
        %v264 = vld [vmem:[%s221 + $0x20] sm:$0xff]
        %v265 = vld [vmem:[%s221 + $0x28] sm:$0xff]
        %v266 = vld [vmem:[%s221 + $0x30] sm:$0xff]
        %v267 = vld [vmem:[%s221 + $0x38] sm:$0xff]
        %v268 = vld [vmem:[%s221 + $0x40] sm:$0xff]
        %v269 = vld [vmem:[%s221 + $0x48] sm:$0xff]
        %v270 = vld [vmem:[%s221 + $0x50] sm:$0xff]
        %v271 = vld [vmem:[%s221 + $0x58] sm:$0xff]
        %v272 = vld [vmem:[%s221 + $0x60] sm:$0xff]
        %v273 = vld [vmem:[%s221 + $0x68] sm:$0xff]
        %v274 = vld [vmem:[%s221 + $0x70] sm:$0xff]
        %v275 = vld [vmem:[%s221 + $0x78] sm:$0xff]
        %v276 = vld [vmem:[%s221 + $0x80] sm:$0xff]
        %v277 = vld [vmem:[%s221 + $0x88] sm:$0xff]
        %v278 = vld [vmem:[%s221 + $0x90] sm:$0xff]
        %v279 = vld [vmem:[%s221 + $0x98] sm:$0xff]
        %v280 = vld [vmem:[%s221 + $0xa0] sm:$0xff]
        %v281 = vld [vmem:[%s221 + $0xa8] sm:$0xff]
        %v282 = vld [vmem:[%s221 + $0xb0] sm:$0xff]
        %v283 = vld [vmem:[%s221 + $0xb8] sm:$0xff]
        %v284 = vld [vmem:[%s221 + $0xc0] sm:$0xff]
        %v285 = vld [vmem:[%s221 + $0xc8] sm:$0xff]
        %v286 = vld [vmem:[%s221 + $0xd0] sm:$0xff]
        %v287 = vld [vmem:[%s221 + $0xd8] sm:$0xff]
        %v288 = vld [vmem:[%s221 + $0xe0] sm:$0xff]
        %v289 = vld [vmem:[%s221 + $0xe8] sm:$0xff]
        %v290 = vld [vmem:[%s221 + $0xf0] sm:$0xff]
        %v291 = vld [vmem:[%s221 + $0xf8] sm:$0xff]
        %v292 = vadd.f32 %v260, %v261
        %v293 = vadd.f32 %v292, %v262
        %v294 = vadd.f32 %v293, %v263
        %v295 = vadd.f32 %v294, %v264
        %v296 = vadd.f32 %v295, %v265
        %v297 = vadd.f32 %v296, %v266
        %v298 = vadd.f32 %v297, %v267
        %v299 = vadd.f32 %v298, %v268
        %v300 = vadd.f32 %v299, %v269
        %v301 = vadd.f32 %v300, %v270
        %v302 = vadd.f32 %v301, %v271
        %v303 = vadd.f32 %v302, %v272
        %v304 = vadd.f32 %v303, %v273
        %v305 = vadd.f32 %v304, %v274
        %v306 = vadd.f32 %v305, %v275
        %v307 = vadd.f32 %v306, %v276
        %v308 = vadd.f32 %v307, %v277
        %v309 = vadd.f32 %v308, %v278
        %v310 = vadd.f32 %v309, %v279
        %v311 = vadd.f32 %v310, %v280
        %v312 = vadd.f32 %v311, %v281
        %v313 = vadd.f32 %v312, %v282
        %v314 = vadd.f32 %v313, %v283
        %v315 = vadd.f32 %v314, %v284
        %v316 = vadd.f32 %v315, %v285
        %v317 = vadd.f32 %v316, %v286
        %v318 = vadd.f32 %v317, %v287
        %v319 = vadd.f32 %v318, %v288
        %v320 = vadd.f32 %v319, %v289
        %v321 = vadd.f32 %v320, %v290
        %v322 = vadd.f32 %v321, %v291
        %v323 = vrot.slane %v322, 4
        %v324 = vadd.f32 %v322, %v323
        %v325 = vrot.slane %v324, 2
        %v326 = vadd.f32 %v324, %v325
        %v327 = vrot.slane %v326, 1
        %v328 = vadd.f32 %v326, %v327
        %v329 = vmul.f32 %v328, 0.00390625
        %v330 = vmul.f32 %v329, %v259
        %v332 = vrot.slane %v259, 1
        %v334 = vadd.f32 %v330, %v332
        %v335 = vld [vmem:[#allocation8] sm:$0xff]
        %v336 = vld [vmem:[#allocation8 + $0x8] sm:$0xff]
        %v337 = vld [vmem:[#allocation8 + $0x10] sm:$0xff]
        %v338 = vld [vmem:[#allocation8 + $0x18] sm:$0xff]
        %v339 = vld [vmem:[#allocation8 + $0x20] sm:$0xff]
        %v340 = vld [vmem:[#allocation8 + $0x28] sm:$0xff]
        %v341 = vld [vmem:[#allocation8 + $0x30] sm:$0xff]
        %v342 = vld [vmem:[#allocation8 + $0x38] sm:$0xff]
        %v343 = vld [vmem:[#allocation8 + $0x40] sm:$0xff]
        %v344 = vld [vmem:[#allocation8 + $0x48] sm:$0xff]
        %v345 = vld [vmem:[#allocation8 + $0x50] sm:$0xff]
        %v346 = vld [vmem:[#allocation8 + $0x58] sm:$0xff]
        %v347 = vld [vmem:[#allocation8 + $0x60] sm:$0xff]
        %v348 = vld [vmem:[#allocation8 + $0x68] sm:$0xff]
        %v349 = vld [vmem:[#allocation8 + $0x70] sm:$0xff]
        %v350 = vld [vmem:[#allocation8 + $0x78] sm:$0xff]
        %351 = vmatprep.subr.mxu0 0.0
        %352 = vmatpush1.msra.mxu0 %v350
        %353 = vmatprep.subr.mxu0 0.0
        %354 = vmatpush1.msra.mxu0 %v349
        %355 = vmatprep.subr.mxu0 0.0
        %356 = vmatpush1.msra.mxu0 %v348
        %357 = vmatprep.subr.mxu0 0.0
        %358 = vmatpush1.msra.mxu0 %v347
        %359 = vmatprep.subr.mxu0 0.0
        %360 = vmatpush1.msra.mxu0 %v346
        %361 = vmatprep.subr.mxu0 0.0
        %362 = vmatpush1.msra.mxu0 %v345
        %363 = vmatprep.subr.mxu0 0.0
        %364 = vmatpush1.msra.mxu0 %v344
        %365 = vmatprep.subr.mxu0 0.0
        %366 = vmatpush1.msra.mxu0 %v343
        %367 = vmatprep.subr.mxu0 0.0
        %368 = vmatpush1.msra.mxu0 %v342
        %369 = vmatprep.subr.mxu0 0.0
        %370 = vmatpush1.msra.mxu0 %v341
        %371 = vmatprep.subr.mxu0 0.0
        %372 = vmatpush1.msra.mxu0 %v340
        %373 = vmatprep.subr.mxu0 0.0
        %374 = vmatpush1.msra.mxu0 %v339
        %375 = vmatprep.subr.mxu0 0.0
        %376 = vmatpush1.msra.mxu0 %v338
        %377 = vmatprep.subr.mxu0 0.0
        %378 = vmatpush1.msra.mxu0 %v337
        %379 = vmatprep.subr.mxu0 0.0
        %380 = vmatpush1.msra.mxu0 %v336
        %381 = vmatprep.subr.mxu0 0.0
        %382 = vmatpush1.msra.mxu0 %v335
        %383 = vmatprep.subr.mxu0 0.0
        %384 = vmatpush2.msra.mxu0 0.0
        %385 = vmatprep.subr.mxu0 0.0
        %386 = vmatpush2.msra.mxu0 0.0
        %387 = vmatprep.subr.mxu0 0.0
        %388 = vmatpush2.msra.mxu0 0.0
        %389 = vmatprep.subr.mxu0 0.0
        %390 = vmatpush2.msra.mxu0 0.0
        %391 = vmatprep.subr.mxu0 0.0
        %392 = vmatpush2.msra.mxu0 0.0
        %393 = vmatprep.subr.mxu0 0.0
        %394 = vmatpush2.msra.mxu0 0.0
        %395 = vmatprep.subr.mxu0 0.0
        %396 = vmatpush2.msra.mxu0 0.0
        %397 = vmatprep.subr.mxu0 0.0
        %398 = vmatpush2.msra.mxu0 0.0
        %399 = vmatprep.subr.mxu0 0.0
        %400 = vmatpush2.msra.mxu0 0.0
        %401 = vmatprep.subr.mxu0 0.0
        %402 = vmatpush2.msra.mxu0 0.0
        %403 = vmatprep.subr.mxu0 0.0
        %404 = vmatpush2.msra.mxu0 0.0
        %405 = vmatprep.subr.mxu0 0.0
        %406 = vmatpush2.msra.mxu0 0.0
        %407 = vmatprep.subr.mxu0 0.0
        %408 = vmatpush2.msra.mxu0 0.0
        %409 = vmatprep.subr.mxu0 0.0
        %410 = vmatpush2.msra.mxu0 0.0
        %411 = vmatprep.subr.mxu0 0.0
        %412 = vmatpush2.msra.mxu0 0.0
        %413 = vmatprep.subr.mxu0 0.0
        %414 = vmatpush2.msra.mxu0 0.0
        %415 = vmatprep.mubr.f32.mxu0 0.0
        %416 = vmatmul.mubr.f32.gmra.mxu0 %v334
        %v417 = vpop.f32.mrf.mxu0
        %v418 = vadd.f32 0.0, %v417
        %v419 = vpop.f32.mrf.mxu0
        %420 = vdwg.mxu0
        %v421 = vrot.slane %v259, 2
        %v423 = vmul.f32 %v418, %v421
        %v424 = vrot.slane %v259, 3
        %v426 = vadd.f32 %v423, %v424
        %v427 = vmax.f32 %v426, 0.0
        %v428 = vlaneseq
        %v429 = vshrl.u32 %v428, 7
        %v430 = vsub.s32 0, %v429
        %v431 = vrot.slane %v427, %v430
        %v432 = vadd.f32 %v260, %v431
        %v433 = vadd.f32 %v261, %v431
        %v434 = vadd.f32 %v262, %v431
        %v435 = vadd.f32 %v263, %v431
        %v436 = vadd.f32 %v264, %v431
        %v437 = vadd.f32 %v265, %v431
        %v438 = vadd.f32 %v266, %v431
        %v439 = vadd.f32 %v267, %v431
        %v440 = vadd.f32 %v268, %v431
        %v441 = vadd.f32 %v269, %v431
        %v442 = vadd.f32 %v270, %v431
        %v443 = vadd.f32 %v271, %v431
        %v444 = vadd.f32 %v272, %v431
        %v445 = vadd.f32 %v273, %v431
        %v446 = vadd.f32 %v274, %v431
        %v447 = vadd.f32 %v275, %v431
        %v448 = vadd.f32 %v276, %v431
        %v449 = vadd.f32 %v277, %v431
        %v450 = vadd.f32 %v278, %v431
        %v451 = vadd.f32 %v279, %v431
        %v452 = vadd.f32 %v280, %v431
        %v453 = vadd.f32 %v281, %v431
        %v454 = vadd.f32 %v282, %v431
        %v455 = vadd.f32 %v283, %v431
        %v456 = vadd.f32 %v284, %v431
        %v457 = vadd.f32 %v285, %v431
        %v458 = vadd.f32 %v286, %v431
        %v459 = vadd.f32 %v287, %v431
        %v460 = vadd.f32 %v288, %v431
        %v461 = vadd.f32 %v289, %v431
        %v462 = vadd.f32 %v290, %v431
        %v463 = vadd.f32 %v291, %v431
        %p464 = scmp.eq.s32.totalorder %s23, 0
        // Predicated region
        $region53: #{tpu_custom_call.1} parent=35 // pred_check
          %p465 = pneg %p464
        $region54: #{tpu_custom_call.1} parent=35 // pred_check_branch
          %467 = sbr.rel (%p465) target = $region56
        $region55: #{tpu_custom_call.1} parent=35 // pred_region
          %468 = vst [vmem:[#allocation2] sm:$0xff] 0
          %469 = vst [vmem:[#allocation2 + $0x8] sm:$0xf] 0
          %470 = vst [vmem:[#allocation2 + $0xc] sm:$0xff] 0
          %471 = vst [vmem:[#allocation2 + $0x14] sm:$0xf] 0
          %s472 = scalar_lea.vmem [#allocation2], 408
          %473 = vst [vmem:[%s472] sm:$0xff] 0
          %474 = vst [vmem:[%s472 + $0x8] sm:$0xf] 0
          %475 = vst [vmem:[%s472 + $0xc] sm:$0xff] 0
          %476 = vst [vmem:[%s472 + $0x14] sm:$0xf] 0
        $region56: #{tpu_custom_call.1} parent=35 // pred_fallthru
          _
        %vm509 = vcmask 1040384
        %v510 = vrot.slane %v432, 7
        %v511 = vrot.slane %v433, 7
        %v512 = vsel %vm509, %v510, %v511
        %v513 = vrot.slane %v434, 7
        %v514 = vrot.slane %v435, 7
        %v515 = vsel %vm509, %v513, %v514
        %v516 = vrot.slane %v436, 7
        %v517 = vrot.slane %v437, 7
        %v518 = vsel %vm509, %v516, %v517
        %v519 = vrot.slane %v438, 7
        %v520 = vrot.slane %v439, 7
        %v521 = vsel %vm509, %v519, %v520
        %v522 = vrot.slane %v440, 7
        %v523 = vrot.slane %v441, 7
        %v524 = vsel %vm509, %v522, %v523
        %v525 = vrot.slane %v442, 7
        %v526 = vrot.slane %v443, 7
        %v527 = vsel %vm509, %v525, %v526
        %v528 = vrot.slane %v444, 7
        %v529 = vrot.slane %v445, 7
        %v530 = vsel %vm509, %v528, %v529
        %v531 = vrot.slane %v446, 7
        %v532 = vrot.slane %v447, 7
        %v533 = vsel %vm509, %v531, %v532
        %v534 = vrot.slane %v448, 7
        %v535 = vrot.slane %v449, 7
        %v536 = vsel %vm509, %v534, %v535
        %v537 = vrot.slane %v450, 7
        %v538 = vrot.slane %v451, 7
        %v539 = vsel %vm509, %v537, %v538
        %v540 = vrot.slane %v452, 7
        %v541 = vrot.slane %v453, 7
        %v542 = vsel %vm509, %v540, %v541
        %v543 = vrot.slane %v454, 7
        %v544 = vrot.slane %v455, 7
        %v545 = vsel %vm509, %v543, %v544
        %v546 = vrot.slane %v456, 7
        %v547 = vrot.slane %v457, 7
        %v548 = vsel %vm509, %v546, %v547
        %v549 = vrot.slane %v458, 7
        %v550 = vrot.slane %v459, 7
        %v551 = vsel %vm509, %v549, %v550
        %v552 = vrot.slane %v460, 7
        %v553 = vrot.slane %v461, 7
        %v554 = vsel %vm509, %v552, %v553
        %v555 = vrot.slane %v462, 7
        %v556 = vrot.slane %v463, 7
        %v557 = vsel %vm509, %v555, %v556
        %v590 = vsel %vm509, 0.0, %v510
        %v591 = vsel %vm509, 0.0, %v513
        %v592 = vsel %vm509, 0.0, %v516
        %v593 = vsel %vm509, 0.0, %v519
        %v594 = vsel %vm509, 0.0, %v522
        %v595 = vsel %vm509, 0.0, %v525
        %v596 = vsel %vm509, 0.0, %v528
        %v597 = vsel %vm509, 0.0, %v531
        %v598 = vsel %vm509, 0.0, %v534
        %v599 = vsel %vm509, 0.0, %v537
        %v600 = vsel %vm509, 0.0, %v540
        %v601 = vsel %vm509, 0.0, %v543
        %v602 = vsel %vm509, 0.0, %v546
        %v603 = vsel %vm509, 0.0, %v549
        %v604 = vsel %vm509, 0.0, %v552
        %v605 = vsel %vm509, 0.0, %v555
        %vm606 = vcmask 1046528
        %v607 = vrot.slane %v432, 1
        %v608 = vrot.slane %v433, 1
        %v609 = vsel %vm606, %v607, %v608
        %v610 = vrot.slane %v434, 1
        %v611 = vrot.slane %v435, 1
        %v612 = vsel %vm606, %v610, %v611
        %v613 = vrot.slane %v436, 1
        %v614 = vrot.slane %v437, 1
        %v615 = vsel %vm606, %v613, %v614
        %v616 = vrot.slane %v438, 1
        %v617 = vrot.slane %v439, 1
        %v618 = vsel %vm606, %v616, %v617
        %v619 = vrot.slane %v440, 1
        %v620 = vrot.slane %v441, 1
        %v621 = vsel %vm606, %v619, %v620
        %v622 = vrot.slane %v442, 1
        %v623 = vrot.slane %v443, 1
        %v624 = vsel %vm606, %v622, %v623
        %v625 = vrot.slane %v444, 1
        %v626 = vrot.slane %v445, 1
        %v627 = vsel %vm606, %v625, %v626
        %v628 = vrot.slane %v446, 1
        %v629 = vrot.slane %v447, 1
        %v630 = vsel %vm606, %v628, %v629
        %v631 = vrot.slane %v448, 1
        %v632 = vrot.slane %v449, 1
        %v633 = vsel %vm606, %v631, %v632
        %v634 = vrot.slane %v450, 1
        %v635 = vrot.slane %v451, 1
        %v636 = vsel %vm606, %v634, %v635
        %v637 = vrot.slane %v452, 1
        %v638 = vrot.slane %v453, 1
        %v639 = vsel %vm606, %v637, %v638
        %v640 = vrot.slane %v454, 1
        %v641 = vrot.slane %v455, 1
        %v642 = vsel %vm606, %v640, %v641
        %v643 = vrot.slane %v456, 1
        %v644 = vrot.slane %v457, 1
        %v645 = vsel %vm606, %v643, %v644
        %v646 = vrot.slane %v458, 1
        %v647 = vrot.slane %v459, 1
        %v648 = vsel %vm606, %v646, %v647
        %v649 = vrot.slane %v460, 1
        %v650 = vrot.slane %v461, 1
        %v651 = vsel %vm606, %v649, %v650
        %v652 = vrot.slane %v462, 1
        %v653 = vrot.slane %v463, 1
        %v654 = vsel %vm606, %v652, %v653
        %v687 = vsel %vm606, %v608, 0.0
        %v688 = vsel %vm606, %v611, 0.0
        %v689 = vsel %vm606, %v614, 0.0
        %v690 = vsel %vm606, %v617, 0.0
        %v691 = vsel %vm606, %v620, 0.0
        %v692 = vsel %vm606, %v623, 0.0
        %v693 = vsel %vm606, %v626, 0.0
        %v694 = vsel %vm606, %v629, 0.0
        %v695 = vsel %vm606, %v632, 0.0
        %v696 = vsel %vm606, %v635, 0.0
        %v697 = vsel %vm606, %v638, 0.0
        %v698 = vsel %vm606, %v641, 0.0
        %v699 = vsel %vm606, %v644, 0.0
        %v700 = vsel %vm606, %v647, 0.0
        %v701 = vsel %vm606, %v650, 0.0
        %v702 = vsel %vm606, %v653, 0.0
        %v703 = vpack.c.bf16 %v512, %v590
        %v704 = vpack.c.bf16 %v515, %v591
        %v705 = vpack.c.bf16 %v518, %v592
        %v706 = vpack.c.bf16 %v521, %v593
        %v707 = vpack.c.bf16 %v524, %v594
        %v708 = vpack.c.bf16 %v527, %v595
        %v709 = vpack.c.bf16 %v530, %v596
        %v710 = vpack.c.bf16 %v533, %v597
        %v711 = vpack.c.bf16 %v536, %v598
        %v712 = vpack.c.bf16 %v539, %v599
        %v713 = vpack.c.bf16 %v542, %v600
        %v714 = vpack.c.bf16 %v545, %v601
        %v715 = vpack.c.bf16 %v548, %v602
        %v716 = vpack.c.bf16 %v551, %v603
        %v717 = vpack.c.bf16 %v554, %v604
        %v718 = vpack.c.bf16 %v557, %v605
        %v735 = vunpack.c.l.b16 %v703
        %v736 = vunpack.c.h.b16 %v703
        %v737 = vunpack.c.l.b16 %v704
        %v738 = vunpack.c.h.b16 %v704
        %v739 = vunpack.c.l.b16 %v705
        %v740 = vunpack.c.h.b16 %v705
        %v741 = vunpack.c.l.b16 %v706
        %v742 = vunpack.c.h.b16 %v706
        %v743 = vunpack.c.l.b16 %v707
        %v744 = vunpack.c.h.b16 %v707
        %v745 = vunpack.c.l.b16 %v708
        %v746 = vunpack.c.h.b16 %v708
        %v747 = vunpack.c.l.b16 %v709
        %v748 = vunpack.c.h.b16 %v709
        %v749 = vunpack.c.l.b16 %v710
        %v750 = vunpack.c.h.b16 %v710
        %v751 = vunpack.c.l.b16 %v711
        %v752 = vunpack.c.h.b16 %v711
        %v753 = vunpack.c.l.b16 %v712
        %v754 = vunpack.c.h.b16 %v712
        %v755 = vunpack.c.l.b16 %v713
        %v756 = vunpack.c.h.b16 %v713
        %v757 = vunpack.c.l.b16 %v714
        %v758 = vunpack.c.h.b16 %v714
        %v759 = vunpack.c.l.b16 %v715
        %v760 = vunpack.c.h.b16 %v715
        %v761 = vunpack.c.l.b16 %v716
        %v762 = vunpack.c.h.b16 %v716
        %v763 = vunpack.c.l.b16 %v717
        %v764 = vunpack.c.h.b16 %v717
        %v765 = vunpack.c.l.b16 %v718
        %v766 = vunpack.c.h.b16 %v718
        %v767 = vpack.c.b16 %v735, %v735
        %v768 = vpack.c.b16 %v736, %v736
        %v769 = vpack.c.b16 %v737, %v737
        %v770 = vpack.c.b16 %v738, %v738
        %v771 = vpack.c.b16 %v739, %v739
        %v772 = vpack.c.b16 %v740, %v740
        %v773 = vpack.c.b16 %v741, %v741
        %v774 = vpack.c.b16 %v742, %v742
        %v775 = vpack.c.b16 %v743, %v743
        %v776 = vpack.c.b16 %v744, %v744
        %v777 = vpack.c.b16 %v745, %v745
        %v778 = vpack.c.b16 %v746, %v746
        %v779 = vpack.c.b16 %v747, %v747
        %v780 = vpack.c.b16 %v748, %v748
        %v781 = vpack.c.b16 %v749, %v749
        %v782 = vpack.c.b16 %v750, %v750
        %v783 = vpack.c.b16 %v751, %v751
        %v784 = vpack.c.b16 %v752, %v752
        %v785 = vpack.c.b16 %v753, %v753
        %v786 = vpack.c.b16 %v754, %v754
        %v787 = vpack.c.b16 %v755, %v755
        %v788 = vpack.c.b16 %v756, %v756
        %v789 = vpack.c.b16 %v757, %v757
        %v790 = vpack.c.b16 %v758, %v758
        %v791 = vpack.c.b16 %v759, %v759
        %v792 = vpack.c.b16 %v760, %v760
        %v793 = vpack.c.b16 %v761, %v761
        %v794 = vpack.c.b16 %v762, %v762
        %v795 = vpack.c.b16 %v763, %v763
        %v796 = vpack.c.b16 %v764, %v764
        %v797 = vpack.c.b16 %v765, %v765
        %v798 = vpack.c.b16 %v766, %v766
        %s831 = scalar_lea.vmem [#allocation2], 24
        %832 = vst [vmem:[%s831] sm:$0xf] %v767
        %833 = vst [vmem:[%s831 + $0xc] sm:$0xf] %v768
        %834 = vst [vmem:[%s831 + $0x18] sm:$0xf] %v769
        %835 = vst [vmem:[%s831 + $0x24] sm:$0xf] %v770
        %836 = vst [vmem:[%s831 + $0x30] sm:$0xf] %v771
        %837 = vst [vmem:[%s831 + $0x3c] sm:$0xf] %v772
        %838 = vst [vmem:[%s831 + $0x48] sm:$0xf] %v773
        %839 = vst [vmem:[%s831 + $0x54] sm:$0xf] %v774
        %840 = vst [vmem:[%s831 + $0x60] sm:$0xf] %v775
        %841 = vst [vmem:[%s831 + $0x6c] sm:$0xf] %v776
        %842 = vst [vmem:[%s831 + $0x78] sm:$0xf] %v777
        %843 = vst [vmem:[%s831 + $0x84] sm:$0xf] %v778
        %844 = vst [vmem:[%s831 + $0x90] sm:$0xf] %v779
        %845 = vst [vmem:[%s831 + $0x9c] sm:$0xf] %v780
        %846 = vst [vmem:[%s831 + $0xa8] sm:$0xf] %v781
        %847 = vst [vmem:[%s831 + $0xb4] sm:$0xf] %v782
        %848 = vst [vmem:[%s831 + $0xc0] sm:$0xf] %v783
        %849 = vst [vmem:[%s831 + $0xcc] sm:$0xf] %v784
        %850 = vst [vmem:[%s831 + $0xd8] sm:$0xf] %v785
        %851 = vst [vmem:[%s831 + $0xe4] sm:$0xf] %v786
        %852 = vst [vmem:[%s831 + $0xf0] sm:$0xf] %v787
        %853 = vst [vmem:[%s831 + $0xfc] sm:$0xf] %v788
        %854 = vst [vmem:[%s831 + $0x108] sm:$0xf] %v789
        %855 = vst [vmem:[%s831 + $0x114] sm:$0xf] %v790
        %856 = vst [vmem:[%s831 + $0x120] sm:$0xf] %v791
        %857 = vst [vmem:[%s831 + $0x12c] sm:$0xf] %v792
        %858 = vst [vmem:[%s831 + $0x138] sm:$0xf] %v793
        %859 = vst [vmem:[%s831 + $0x144] sm:$0xf] %v794
        %860 = vst [vmem:[%s831 + $0x150] sm:$0xf] %v795
        %861 = vst [vmem:[%s831 + $0x15c] sm:$0xf] %v796
        %862 = vst [vmem:[%s831 + $0x168] sm:$0xf] %v797
        %863 = vst [vmem:[%s831 + $0x174] sm:$0xf] %v798
        %v864 = vpack.c.bf16 %v433, %v432
        %v865 = vpack.c.bf16 %v435, %v434
        %v866 = vpack.c.bf16 %v437, %v436
        %v867 = vpack.c.bf16 %v439, %v438
        %v868 = vpack.c.bf16 %v441, %v440
        %v869 = vpack.c.bf16 %v443, %v442
        %v870 = vpack.c.bf16 %v445, %v444
        %v871 = vpack.c.bf16 %v447, %v446
        %v872 = vpack.c.bf16 %v449, %v448
        %v873 = vpack.c.bf16 %v451, %v450
        %v874 = vpack.c.bf16 %v453, %v452
        %v875 = vpack.c.bf16 %v455, %v454
        %v876 = vpack.c.bf16 %v457, %v456
        %v877 = vpack.c.bf16 %v459, %v458
        %v878 = vpack.c.bf16 %v461, %v460
        %v879 = vpack.c.bf16 %v463, %v462
        %v896 = vunpack.c.l.b16 %v864
        %v897 = vunpack.c.h.b16 %v864
        %v898 = vunpack.c.l.b16 %v865
        %v899 = vunpack.c.h.b16 %v865
        %v900 = vunpack.c.l.b16 %v866
        %v901 = vunpack.c.h.b16 %v866
        %v902 = vunpack.c.l.b16 %v867
        %v903 = vunpack.c.h.b16 %v867
        %v904 = vunpack.c.l.b16 %v868
        %v905 = vunpack.c.h.b16 %v868
        %v906 = vunpack.c.l.b16 %v869
        %v907 = vunpack.c.h.b16 %v869
        %v908 = vunpack.c.l.b16 %v870
        %v909 = vunpack.c.h.b16 %v870
        %v910 = vunpack.c.l.b16 %v871
        %v911 = vunpack.c.h.b16 %v871
        %v912 = vunpack.c.l.b16 %v872
        %v913 = vunpack.c.h.b16 %v872
        %v914 = vunpack.c.l.b16 %v873
        %v915 = vunpack.c.h.b16 %v873
        %v916 = vunpack.c.l.b16 %v874
        %v917 = vunpack.c.h.b16 %v874
        %v918 = vunpack.c.l.b16 %v875
        %v919 = vunpack.c.h.b16 %v875
        %v920 = vunpack.c.l.b16 %v876
        %v921 = vunpack.c.h.b16 %v876
        %v922 = vunpack.c.l.b16 %v877
        %v923 = vunpack.c.h.b16 %v877
        %v924 = vunpack.c.l.b16 %v878
        %v925 = vunpack.c.h.b16 %v878
        %v926 = vunpack.c.l.b16 %v879
        %v927 = vunpack.c.h.b16 %v879
        %v928 = vpack.c.b16 %v896, %v896
        %v929 = vpack.c.b16 %v897, %v897
        %v930 = vpack.c.b16 %v898, %v898
        %v931 = vpack.c.b16 %v899, %v899
        %v932 = vpack.c.b16 %v900, %v900
        %v933 = vpack.c.b16 %v901, %v901
        %v934 = vpack.c.b16 %v902, %v902
        %v935 = vpack.c.b16 %v903, %v903
        %v936 = vpack.c.b16 %v904, %v904
        %v937 = vpack.c.b16 %v905, %v905
        %v938 = vpack.c.b16 %v906, %v906
        %v939 = vpack.c.b16 %v907, %v907
        %v940 = vpack.c.b16 %v908, %v908
        %v941 = vpack.c.b16 %v909, %v909
        %v942 = vpack.c.b16 %v910, %v910
        %v943 = vpack.c.b16 %v911, %v911
        %v944 = vpack.c.b16 %v912, %v912
        %v945 = vpack.c.b16 %v913, %v913
        %v946 = vpack.c.b16 %v914, %v914
        %v947 = vpack.c.b16 %v915, %v915
        %v948 = vpack.c.b16 %v916, %v916
        %v949 = vpack.c.b16 %v917, %v917
        %v950 = vpack.c.b16 %v918, %v918
        %v951 = vpack.c.b16 %v919, %v919
        %v952 = vpack.c.b16 %v920, %v920
        %v953 = vpack.c.b16 %v921, %v921
        %v954 = vpack.c.b16 %v922, %v922
        %v955 = vpack.c.b16 %v923, %v923
        %v956 = vpack.c.b16 %v924, %v924
        %v957 = vpack.c.b16 %v925, %v925
        %v958 = vpack.c.b16 %v926, %v926
        %v959 = vpack.c.b16 %v927, %v927
        %992 = vst [vmem:[%s831 + $0x4] sm:$0xf] %v928
        %993 = vst [vmem:[%s831 + $0x10] sm:$0xf] %v929
        %994 = vst [vmem:[%s831 + $0x1c] sm:$0xf] %v930
        %995 = vst [vmem:[%s831 + $0x28] sm:$0xf] %v931
        %996 = vst [vmem:[%s831 + $0x34] sm:$0xf] %v932
        %997 = vst [vmem:[%s831 + $0x40] sm:$0xf] %v933
        %998 = vst [vmem:[%s831 + $0x4c] sm:$0xf] %v934
        %999 = vst [vmem:[%s831 + $0x58] sm:$0xf] %v935
        %1000 = vst [vmem:[%s831 + $0x64] sm:$0xf] %v936
        %1001 = vst [vmem:[%s831 + $0x70] sm:$0xf] %v937
        %1002 = vst [vmem:[%s831 + $0x7c] sm:$0xf] %v938
        %1003 = vst [vmem:[%s831 + $0x88] sm:$0xf] %v939
        %1004 = vst [vmem:[%s831 + $0x94] sm:$0xf] %v940
        %1005 = vst [vmem:[%s831 + $0xa0] sm:$0xf] %v941
        %1006 = vst [vmem:[%s831 + $0xac] sm:$0xf] %v942
        %1007 = vst [vmem:[%s831 + $0xb8] sm:$0xf] %v943
        %1008 = vst [vmem:[%s831 + $0xc4] sm:$0xf] %v944
        %1009 = vst [vmem:[%s831 + $0xd0] sm:$0xf] %v945
        %1010 = vst [vmem:[%s831 + $0xdc] sm:$0xf] %v946
        %1011 = vst [vmem:[%s831 + $0xe8] sm:$0xf] %v947
        %1012 = vst [vmem:[%s831 + $0xf4] sm:$0xf] %v948
        %1013 = vst [vmem:[%s831 + $0x100] sm:$0xf] %v949
        %1014 = vst [vmem:[%s831 + $0x10c] sm:$0xf] %v950
        %1015 = vst [vmem:[%s831 + $0x118] sm:$0xf] %v951
        %1016 = vst [vmem:[%s831 + $0x124] sm:$0xf] %v952
        %1017 = vst [vmem:[%s831 + $0x130] sm:$0xf] %v953
        %1018 = vst [vmem:[%s831 + $0x13c] sm:$0xf] %v954
        %1019 = vst [vmem:[%s831 + $0x148] sm:$0xf] %v955
        %1020 = vst [vmem:[%s831 + $0x154] sm:$0xf] %v956
        %1021 = vst [vmem:[%s831 + $0x160] sm:$0xf] %v957
        %1022 = vst [vmem:[%s831 + $0x16c] sm:$0xf] %v958
        %1023 = vst [vmem:[%s831 + $0x178] sm:$0xf] %v959
        %v1024 = vpack.c.bf16 %v687, %v609
        %v1025 = vpack.c.bf16 %v688, %v612
        %v1026 = vpack.c.bf16 %v689, %v615
        %v1027 = vpack.c.bf16 %v690, %v618
        %v1028 = vpack.c.bf16 %v691, %v621
        %v1029 = vpack.c.bf16 %v692, %v624
        %v1030 = vpack.c.bf16 %v693, %v627
        %v1031 = vpack.c.bf16 %v694, %v630
        %v1032 = vpack.c.bf16 %v695, %v633
        %v1033 = vpack.c.bf16 %v696, %v636
        %v1034 = vpack.c.bf16 %v697, %v639
        %v1035 = vpack.c.bf16 %v698, %v642
        %v1036 = vpack.c.bf16 %v699, %v645
        %v1037 = vpack.c.bf16 %v700, %v648
        %v1038 = vpack.c.bf16 %v701, %v651
        %v1039 = vpack.c.bf16 %v702, %v654
        %v1056 = vunpack.c.l.b16 %v1024
        %v1057 = vunpack.c.h.b16 %v1024
        %v1058 = vunpack.c.l.b16 %v1025
        %v1059 = vunpack.c.h.b16 %v1025
        %v1060 = vunpack.c.l.b16 %v1026
        %v1061 = vunpack.c.h.b16 %v1026
        %v1062 = vunpack.c.l.b16 %v1027
        %v1063 = vunpack.c.h.b16 %v1027
        %v1064 = vunpack.c.l.b16 %v1028
        %v1065 = vunpack.c.h.b16 %v1028
        %v1066 = vunpack.c.l.b16 %v1029
        %v1067 = vunpack.c.h.b16 %v1029
        %v1068 = vunpack.c.l.b16 %v1030
        %v1069 = vunpack.c.h.b16 %v1030
        %v1070 = vunpack.c.l.b16 %v1031
        %v1071 = vunpack.c.h.b16 %v1031
        %v1072 = vunpack.c.l.b16 %v1032
        %v1073 = vunpack.c.h.b16 %v1032
        %v1074 = vunpack.c.l.b16 %v1033
        %v1075 = vunpack.c.h.b16 %v1033
        %v1076 = vunpack.c.l.b16 %v1034
        %v1077 = vunpack.c.h.b16 %v1034
        %v1078 = vunpack.c.l.b16 %v1035
        %v1079 = vunpack.c.h.b16 %v1035
        %v1080 = vunpack.c.l.b16 %v1036
        %v1081 = vunpack.c.h.b16 %v1036
        %v1082 = vunpack.c.l.b16 %v1037
        %v1083 = vunpack.c.h.b16 %v1037
        %v1084 = vunpack.c.l.b16 %v1038
        %v1085 = vunpack.c.h.b16 %v1038
        %v1086 = vunpack.c.l.b16 %v1039
        %v1087 = vunpack.c.h.b16 %v1039
        %v1088 = vpack.c.b16 %v1056, %v1056
        %v1089 = vpack.c.b16 %v1057, %v1057
        %v1090 = vpack.c.b16 %v1058, %v1058
        %v1091 = vpack.c.b16 %v1059, %v1059
        %v1092 = vpack.c.b16 %v1060, %v1060
        %v1093 = vpack.c.b16 %v1061, %v1061
        %v1094 = vpack.c.b16 %v1062, %v1062
        %v1095 = vpack.c.b16 %v1063, %v1063
        %v1096 = vpack.c.b16 %v1064, %v1064
        %v1097 = vpack.c.b16 %v1065, %v1065
        %v1098 = vpack.c.b16 %v1066, %v1066
        %v1099 = vpack.c.b16 %v1067, %v1067
        %v1100 = vpack.c.b16 %v1068, %v1068
        %v1101 = vpack.c.b16 %v1069, %v1069
        %v1102 = vpack.c.b16 %v1070, %v1070
        %v1103 = vpack.c.b16 %v1071, %v1071
        %v1104 = vpack.c.b16 %v1072, %v1072
        %v1105 = vpack.c.b16 %v1073, %v1073
        %v1106 = vpack.c.b16 %v1074, %v1074
        %v1107 = vpack.c.b16 %v1075, %v1075
        %v1108 = vpack.c.b16 %v1076, %v1076
        %v1109 = vpack.c.b16 %v1077, %v1077
        %v1110 = vpack.c.b16 %v1078, %v1078
        %v1111 = vpack.c.b16 %v1079, %v1079
        %v1112 = vpack.c.b16 %v1080, %v1080
        %v1113 = vpack.c.b16 %v1081, %v1081
        %v1114 = vpack.c.b16 %v1082, %v1082
        %v1115 = vpack.c.b16 %v1083, %v1083
        %v1116 = vpack.c.b16 %v1084, %v1084
        %v1117 = vpack.c.b16 %v1085, %v1085
        %v1118 = vpack.c.b16 %v1086, %v1086
        %v1119 = vpack.c.b16 %v1087, %v1087
        %1152 = vst [vmem:[%s831 + $0x8] sm:$0xf] %v1088
        %1153 = vst [vmem:[%s831 + $0x14] sm:$0xf] %v1089
        %1154 = vst [vmem:[%s831 + $0x20] sm:$0xf] %v1090
        %1155 = vst [vmem:[%s831 + $0x2c] sm:$0xf] %v1091
        %1156 = vst [vmem:[%s831 + $0x38] sm:$0xf] %v1092
        %1157 = vst [vmem:[%s831 + $0x44] sm:$0xf] %v1093
        %1158 = vst [vmem:[%s831 + $0x50] sm:$0xf] %v1094
        %1159 = vst [vmem:[%s831 + $0x5c] sm:$0xf] %v1095
        %1160 = vst [vmem:[%s831 + $0x68] sm:$0xf] %v1096
        %1161 = vst [vmem:[%s831 + $0x74] sm:$0xf] %v1097
        %1162 = vst [vmem:[%s831 + $0x80] sm:$0xf] %v1098
        %1163 = vst [vmem:[%s831 + $0x8c] sm:$0xf] %v1099
        %1164 = vst [vmem:[%s831 + $0x98] sm:$0xf] %v1100
        %1165 = vst [vmem:[%s831 + $0xa4] sm:$0xf] %v1101
        %1166 = vst [vmem:[%s831 + $0xb0] sm:$0xf] %v1102
        %1167 = vst [vmem:[%s831 + $0xbc] sm:$0xf] %v1103
        %1168 = vst [vmem:[%s831 + $0xc8] sm:$0xf] %v1104
        %1169 = vst [vmem:[%s831 + $0xd4] sm:$0xf] %v1105
        %1170 = vst [vmem:[%s831 + $0xe0] sm:$0xf] %v1106
        %1171 = vst [vmem:[%s831 + $0xec] sm:$0xf] %v1107
        %1172 = vst [vmem:[%s831 + $0xf8] sm:$0xf] %v1108
        %1173 = vst [vmem:[%s831 + $0x104] sm:$0xf] %v1109
        %1174 = vst [vmem:[%s831 + $0x110] sm:$0xf] %v1110
        %1175 = vst [vmem:[%s831 + $0x11c] sm:$0xf] %v1111
        %1176 = vst [vmem:[%s831 + $0x128] sm:$0xf] %v1112
        %1177 = vst [vmem:[%s831 + $0x134] sm:$0xf] %v1113
        %1178 = vst [vmem:[%s831 + $0x140] sm:$0xf] %v1114
        %1179 = vst [vmem:[%s831 + $0x14c] sm:$0xf] %v1115
        %1180 = vst [vmem:[%s831 + $0x158] sm:$0xf] %v1116
        %1181 = vst [vmem:[%s831 + $0x164] sm:$0xf] %v1117
        %1182 = vst [vmem:[%s831 + $0x170] sm:$0xf] %v1118
        %1183 = vst [vmem:[%s831 + $0x17c] sm:$0xf] %v1119
        loop: start=0, step=1, limit=2
        $region57: #{tpu_custom_call.1} parent=35 // loop_pre_header
          _
        $region58: #{tpu_custom_call.1} parent=35 // loop_header
          %s1185 = sphi 0, %s1189
          %p1186 = scmp.ge.s32.totalorder %s1185, 2
        $region59: #{tpu_custom_call.1} parent=35 // loop_header_branch
          %1188 = sbr.rel (%p1186) target = $region63
        $region60: #{tpu_custom_call.1} parent=35 // loop_body
          %s1190 = smul.u32 %s1185, 8
          %s1191 = smul.u32 %s1190, 6
          %s1192 = smul.addr %s1191, 4
          %s1193 = scalar_lea.vmem [#allocation2], %s1192
          %v1194 = vld [vmem:[%s1193] sm:$0xff]
          %v1195 = vld [vmem:[%s1193 + $0x8] sm:$0xf]
          %v1196 = vld [vmem:[%s1193 + $0xc] sm:$0xff]
          %v1197 = vld [vmem:[%s1193 + $0x14] sm:$0xf]
          %v1198 = vld [vmem:[%s1193 + $0x18] sm:$0xff]
          %v1199 = vld [vmem:[%s1193 + $0x20] sm:$0xf]
          %v1200 = vld [vmem:[%s1193 + $0x24] sm:$0xff]
          %v1201 = vld [vmem:[%s1193 + $0x2c] sm:$0xf]
          %v1202 = vld [vmem:[%s1193 + $0x30] sm:$0xff]
          %v1203 = vld [vmem:[%s1193 + $0x38] sm:$0xf]
          %v1204 = vld [vmem:[%s1193 + $0x3c] sm:$0xff]
          %v1205 = vld [vmem:[%s1193 + $0x44] sm:$0xf]
          %v1206 = vld [vmem:[%s1193 + $0x48] sm:$0xff]
          %v1207 = vld [vmem:[%s1193 + $0x50] sm:$0xf]
          %v1208 = vld [vmem:[%s1193 + $0x54] sm:$0xff]
          %v1209 = vld [vmem:[%s1193 + $0x5c] sm:$0xf]
          %v1210 = vld [vmem:[%s1193 + $0x60] sm:$0xff]
          %v1211 = vld [vmem:[%s1193 + $0x68] sm:$0xf]
          %v1212 = vld [vmem:[%s1193 + $0x6c] sm:$0xff]
          %v1213 = vld [vmem:[%s1193 + $0x74] sm:$0xf]
          %v1214 = vld [vmem:[%s1193 + $0x78] sm:$0xff]
          %v1215 = vld [vmem:[%s1193 + $0x80] sm:$0xf]
          %v1216 = vld [vmem:[%s1193 + $0x84] sm:$0xff]
          %v1217 = vld [vmem:[%s1193 + $0x8c] sm:$0xf]
          %v1218 = vld [vmem:[%s1193 + $0x90] sm:$0xff]
          %v1219 = vld [vmem:[%s1193 + $0x98] sm:$0xf]
          %v1220 = vld [vmem:[%s1193 + $0x9c] sm:$0xff]
          %v1221 = vld [vmem:[%s1193 + $0xa4] sm:$0xf]
          %v1222 = vld [vmem:[%s1193 + $0xa8] sm:$0xff]
          %v1223 = vld [vmem:[%s1193 + $0xb0] sm:$0xf]
          %v1224 = vld [vmem:[%s1193 + $0xb4] sm:$0xff]
          %v1225 = vld [vmem:[%s1193 + $0xbc] sm:$0xf]
          %v1226 = vld [vmem:[#allocation9] sm:$0xf]
          %v1227 = vld [vmem:[#allocation9 + $0x4] sm:$0xf]
          %v1228 = vld [vmem:[#allocation9 + $0x8] sm:$0xf]
          %v1229 = vld [vmem:[#allocation9 + $0xc] sm:$0xf]
          %v1230 = vld [vmem:[#allocation9 + $0x10] sm:$0xf]
          %v1231 = vld [vmem:[#allocation9 + $0x14] sm:$0xf]
          %v1232 = vld [vmem:[#allocation9 + $0x18] sm:$0xf]
          %v1233 = vld [vmem:[#allocation9 + $0x1c] sm:$0xf]
          %v1234 = vld [vmem:[#allocation9 + $0x20] sm:$0xf]
          %v1235 = vld [vmem:[#allocation9 + $0x24] sm:$0xf]
          %v1236 = vld [vmem:[#allocation9 + $0x28] sm:$0xf]
          %v1237 = vld [vmem:[#allocation9 + $0x2c] sm:$0xf]
          %v1238 = vld [vmem:[#allocation9 + $0x30] sm:$0xf]
          %v1239 = vld [vmem:[#allocation9 + $0x34] sm:$0xf]
          %v1240 = vld [vmem:[#allocation9 + $0x38] sm:$0xf]
          %v1241 = vld [vmem:[#allocation9 + $0x3c] sm:$0xf]
          %v1242 = vld [vmem:[#allocation9 + $0x40] sm:$0xf]
          %v1243 = vld [vmem:[#allocation9 + $0x44] sm:$0xf]
          %v1244 = vld [vmem:[#allocation9 + $0x48] sm:$0xf]
          %v1245 = vld [vmem:[#allocation9 + $0x4c] sm:$0xf]
          %v1246 = vld [vmem:[#allocation9 + $0x50] sm:$0xf]
          %v1247 = vld [vmem:[#allocation9 + $0x54] sm:$0xf]
          %v1248 = vld [vmem:[#allocation9 + $0x58] sm:$0xf]
          %v1249 = vld [vmem:[#allocation9 + $0x5c] sm:$0xf]
          %v1250 = vld [vmem:[#allocation9 + $0x60] sm:$0xf]
          %v1251 = vld [vmem:[#allocation9 + $0x64] sm:$0xf]
          %v1252 = vld [vmem:[#allocation9 + $0x68] sm:$0xf]
          %v1253 = vld [vmem:[#allocation9 + $0x6c] sm:$0xf]
          %v1254 = vld [vmem:[#allocation9 + $0x70] sm:$0xf]
          %v1255 = vld [vmem:[#allocation9 + $0x74] sm:$0xf]
          %v1256 = vld [vmem:[#allocation9 + $0x78] sm:$0xf]
          %v1257 = vld [vmem:[#allocation9 + $0x7c] sm:$0xf]
          %v1258 = vld [vmem:[#allocation9 + $0x80] sm:$0xf]
          %v1259 = vld [vmem:[#allocation9 + $0x84] sm:$0xf]
          %v1260 = vld [vmem:[#allocation9 + $0x88] sm:$0xf]
          %v1261 = vld [vmem:[#allocation9 + $0x8c] sm:$0xf]
          %v1262 = vld [vmem:[#allocation9 + $0x90] sm:$0xf]
          %v1263 = vld [vmem:[#allocation9 + $0x94] sm:$0xf]
          %v1264 = vld [vmem:[#allocation9 + $0x98] sm:$0xf]
          %v1265 = vld [vmem:[#allocation9 + $0x9c] sm:$0xf]
          %v1266 = vld [vmem:[#allocation9 + $0xa0] sm:$0xf]
          %v1267 = vld [vmem:[#allocation9 + $0xa4] sm:$0xf]
          %v1268 = vld [vmem:[#allocation9 + $0xa8] sm:$0xf]
          %v1269 = vld [vmem:[#allocation9 + $0xac] sm:$0xf]
          %v1270 = vld [vmem:[#allocation9 + $0xb0] sm:$0xf]
          %v1271 = vld [vmem:[#allocation9 + $0xb4] sm:$0xf]
          %v1272 = vld [vmem:[#allocation9 + $0xb8] sm:$0xf]
          %v1273 = vld [vmem:[#allocation9 + $0xbc] sm:$0xf]
          %s1274 = sadd.s32 %s1190, 1
          %s1275 = smul.u32 %s1274, 6
          %s1276 = smul.addr %s1275, 4
          %s1277 = scalar_lea.vmem [#allocation2], %s1276
          %v1278 = vld [vmem:[%s1277] sm:$0xff]
          %v1279 = vld [vmem:[%s1277 + $0x8] sm:$0xf]
          %v1280 = vld [vmem:[%s1277 + $0xc] sm:$0xff]
          %v1281 = vld [vmem:[%s1277 + $0x14] sm:$0xf]
          %v1282 = vld [vmem:[%s1277 + $0x18] sm:$0xff]
          %v1283 = vld [vmem:[%s1277 + $0x20] sm:$0xf]
          %v1284 = vld [vmem:[%s1277 + $0x24] sm:$0xff]
          %v1285 = vld [vmem:[%s1277 + $0x2c] sm:$0xf]
          %v1286 = vld [vmem:[%s1277 + $0x30] sm:$0xff]
          %v1287 = vld [vmem:[%s1277 + $0x38] sm:$0xf]
          %v1288 = vld [vmem:[%s1277 + $0x3c] sm:$0xff]
          %v1289 = vld [vmem:[%s1277 + $0x44] sm:$0xf]
          %v1290 = vld [vmem:[%s1277 + $0x48] sm:$0xff]
          %v1291 = vld [vmem:[%s1277 + $0x50] sm:$0xf]
          %v1292 = vld [vmem:[%s1277 + $0x54] sm:$0xff]
          %v1293 = vld [vmem:[%s1277 + $0x5c] sm:$0xf]
          %v1294 = vld [vmem:[%s1277 + $0x60] sm:$0xff]
          %v1295 = vld [vmem:[%s1277 + $0x68] sm:$0xf]
          %v1296 = vld [vmem:[%s1277 + $0x6c] sm:$0xff]
          %v1297 = vld [vmem:[%s1277 + $0x74] sm:$0xf]
          %v1298 = vld [vmem:[%s1277 + $0x78] sm:$0xff]
          %v1299 = vld [vmem:[%s1277 + $0x80] sm:$0xf]
          %v1300 = vld [vmem:[%s1277 + $0x84] sm:$0xff]
          %v1301 = vld [vmem:[%s1277 + $0x8c] sm:$0xf]
          %v1302 = vld [vmem:[%s1277 + $0x90] sm:$0xff]
          %v1303 = vld [vmem:[%s1277 + $0x98] sm:$0xf]
          %v1304 = vld [vmem:[%s1277 + $0x9c] sm:$0xff]
          %v1305 = vld [vmem:[%s1277 + $0xa4] sm:$0xf]
          %v1306 = vld [vmem:[%s1277 + $0xa8] sm:$0xff]
          %v1307 = vld [vmem:[%s1277 + $0xb0] sm:$0xf]
          %v1308 = vld [vmem:[%s1277 + $0xb4] sm:$0xff]
          %v1309 = vld [vmem:[%s1277 + $0xbc] sm:$0xf]
          %s1310 = scalar_lea.vmem [#allocation9], 192
          %v1311 = vld [vmem:[%s1310] sm:$0xf]
          %v1312 = vld [vmem:[%s1310 + $0x4] sm:$0xf]
          %v1313 = vld [vmem:[%s1310 + $0x8] sm:$0xf]
          %v1314 = vld [vmem:[%s1310 + $0xc] sm:$0xf]
          %v1315 = vld [vmem:[%s1310 + $0x10] sm:$0xf]
          %v1316 = vld [vmem:[%s1310 + $0x14] sm:$0xf]
          %v1317 = vld [vmem:[%s1310 + $0x18] sm:$0xf]
          %v1318 = vld [vmem:[%s1310 + $0x1c] sm:$0xf]
          %v1319 = vld [vmem:[%s1310 + $0x20] sm:$0xf]
          %v1320 = vld [vmem:[%s1310 + $0x24] sm:$0xf]
          %v1321 = vld [vmem:[%s1310 + $0x28] sm:$0xf]
          %v1322 = vld [vmem:[%s1310 + $0x2c] sm:$0xf]
          %v1323 = vld [vmem:[%s1310 + $0x30] sm:$0xf]
          %v1324 = vld [vmem:[%s1310 + $0x34] sm:$0xf]
          %v1325 = vld [vmem:[%s1310 + $0x38] sm:$0xf]
          %v1326 = vld [vmem:[%s1310 + $0x3c] sm:$0xf]
          %v1327 = vld [vmem:[%s1310 + $0x40] sm:$0xf]
          %v1328 = vld [vmem:[%s1310 + $0x44] sm:$0xf]
          %v1329 = vld [vmem:[%s1310 + $0x48] sm:$0xf]
          %v1330 = vld [vmem:[%s1310 + $0x4c] sm:$0xf]
          %v1331 = vld [vmem:[%s1310 + $0x50] sm:$0xf]
          %v1332 = vld [vmem:[%s1310 + $0x54] sm:$0xf]
          %v1333 = vld [vmem:[%s1310 + $0x58] sm:$0xf]
          %v1334 = vld [vmem:[%s1310 + $0x5c] sm:$0xf]
          %v1335 = vld [vmem:[%s1310 + $0x60] sm:$0xf]
          %v1336 = vld [vmem:[%s1310 + $0x64] sm:$0xf]
          %v1337 = vld [vmem:[%s1310 + $0x68] sm:$0xf]
          %v1338 = vld [vmem:[%s1310 + $0x6c] sm:$0xf]
          %v1339 = vld [vmem:[%s1310 + $0x70] sm:$0xf]
          %v1340 = vld [vmem:[%s1310 + $0x74] sm:$0xf]
          %v1341 = vld [vmem:[%s1310 + $0x78] sm:$0xf]
          %v1342 = vld [vmem:[%s1310 + $0x7c] sm:$0xf]
          %v1343 = vld [vmem:[%s1310 + $0x80] sm:$0xf]
          %v1344 = vld [vmem:[%s1310 + $0x84] sm:$0xf]
          %v1345 = vld [vmem:[%s1310 + $0x88] sm:$0xf]
          %v1346 = vld [vmem:[%s1310 + $0x8c] sm:$0xf]
          %v1347 = vld [vmem:[%s1310 + $0x90] sm:$0xf]
          %v1348 = vld [vmem:[%s1310 + $0x94] sm:$0xf]
          %v1349 = vld [vmem:[%s1310 + $0x98] sm:$0xf]
          %v1350 = vld [vmem:[%s1310 + $0x9c] sm:$0xf]
          %v1351 = vld [vmem:[%s1310 + $0xa0] sm:$0xf]
          %v1352 = vld [vmem:[%s1310 + $0xa4] sm:$0xf]
          %v1353 = vld [vmem:[%s1310 + $0xa8] sm:$0xf]
          %v1354 = vld [vmem:[%s1310 + $0xac] sm:$0xf]
          %v1355 = vld [vmem:[%s1310 + $0xb0] sm:$0xf]
          %v1356 = vld [vmem:[%s1310 + $0xb4] sm:$0xf]
          %v1357 = vld [vmem:[%s1310 + $0xb8] sm:$0xf]
          %v1358 = vld [vmem:[%s1310 + $0xbc] sm:$0xf]
          %v1391 = vunpack.c.l.b16 %v1278
          %v1392 = vunpack.c.h.b16 %v1278
          %v1393 = vunpack.c.l.b16 %v1279
          %v1394 = vunpack.c.l.b16 %v1280
          %v1395 = vunpack.c.h.b16 %v1280
          %v1396 = vunpack.c.l.b16 %v1281
          %v1397 = vunpack.c.l.b16 %v1282
          %v1398 = vunpack.c.h.b16 %v1282
          %v1399 = vunpack.c.l.b16 %v1283
          %v1400 = vunpack.c.l.b16 %v1284
          %v1401 = vunpack.c.h.b16 %v1284
          %v1402 = vunpack.c.l.b16 %v1285
          %v1403 = vunpack.c.l.b16 %v1286
          %v1404 = vunpack.c.h.b16 %v1286
          %v1405 = vunpack.c.l.b16 %v1287
          %v1406 = vunpack.c.l.b16 %v1288
          %v1407 = vunpack.c.h.b16 %v1288
          %v1408 = vunpack.c.l.b16 %v1289
          %v1409 = vunpack.c.l.b16 %v1290
          %v1410 = vunpack.c.h.b16 %v1290
          %v1411 = vunpack.c.l.b16 %v1291
          %v1412 = vunpack.c.l.b16 %v1292
          %v1413 = vunpack.c.h.b16 %v1292
          %v1414 = vunpack.c.l.b16 %v1293
          %v1415 = vunpack.c.l.b16 %v1294
          %v1416 = vunpack.c.h.b16 %v1294
          %v1417 = vunpack.c.l.b16 %v1295
          %v1418 = vunpack.c.l.b16 %v1296
          %v1419 = vunpack.c.h.b16 %v1296
          %v1420 = vunpack.c.l.b16 %v1297
          %v1421 = vunpack.c.l.b16 %v1298
          %v1422 = vunpack.c.h.b16 %v1298
          %v1423 = vunpack.c.l.b16 %v1299
          %v1424 = vunpack.c.l.b16 %v1300
          %v1425 = vunpack.c.h.b16 %v1300
          %v1426 = vunpack.c.l.b16 %v1301
          %v1427 = vunpack.c.l.b16 %v1302
          %v1428 = vunpack.c.h.b16 %v1302
          %v1429 = vunpack.c.l.b16 %v1303
          %v1430 = vunpack.c.l.b16 %v1304
          %v1431 = vunpack.c.h.b16 %v1304
          %v1432 = vunpack.c.l.b16 %v1305
          %v1433 = vunpack.c.l.b16 %v1306
          %v1434 = vunpack.c.h.b16 %v1306
          %v1435 = vunpack.c.l.b16 %v1307
          %v1436 = vunpack.c.l.b16 %v1308
          %v1437 = vunpack.c.h.b16 %v1308
          %v1438 = vunpack.c.l.b16 %v1309
          %v1439 = vpack.c.b16 %v1394, %v1391
          %v1440 = vpack.c.b16 %v1395, %v1392
          %v1441 = vpack.c.b16 %v1396, %v1393
          %v1442 = vpack.c.b16 %v1400, %v1397
          %v1443 = vpack.c.b16 %v1401, %v1398
          %v1444 = vpack.c.b16 %v1402, %v1399
          %v1445 = vpack.c.b16 %v1406, %v1403
          %v1446 = vpack.c.b16 %v1407, %v1404
          %v1447 = vpack.c.b16 %v1408, %v1405
          %v1448 = vpack.c.b16 %v1412, %v1409
          %v1449 = vpack.c.b16 %v1413, %v1410
          %v1450 = vpack.c.b16 %v1414, %v1411
          %v1451 = vpack.c.b16 %v1418, %v1415
          %v1452 = vpack.c.b16 %v1419, %v1416
          %v1453 = vpack.c.b16 %v1420, %v1417
          %v1454 = vpack.c.b16 %v1424, %v1421
          %v1455 = vpack.c.b16 %v1425, %v1422
          %v1456 = vpack.c.b16 %v1426, %v1423
          %v1457 = vpack.c.b16 %v1430, %v1427
          %v1458 = vpack.c.b16 %v1431, %v1428
          %v1459 = vpack.c.b16 %v1432, %v1429
          %v1460 = vpack.c.b16 %v1436, %v1433
          %v1461 = vpack.c.b16 %v1437, %v1434
          %v1462 = vpack.c.b16 %v1438, %v1435
          %v1535 = vunpack.c.l.b16 %v1311
          %v1536 = vunpack.c.l.b16 %v1312
          %v1537 = vunpack.c.l.b16 %v1313
          %v1538 = vunpack.c.l.b16 %v1314
          %v1539 = vunpack.c.l.b16 %v1315
          %v1540 = vunpack.c.l.b16 %v1316
          %v1541 = vunpack.c.l.b16 %v1317
          %v1542 = vunpack.c.l.b16 %v1318
          %v1543 = vunpack.c.l.b16 %v1319
          %v1544 = vunpack.c.l.b16 %v1320
          %v1545 = vunpack.c.l.b16 %v1321
          %v1546 = vunpack.c.l.b16 %v1322
          %v1547 = vunpack.c.l.b16 %v1323
          %v1548 = vunpack.c.l.b16 %v1324
          %v1549 = vunpack.c.l.b16 %v1325
          %v1550 = vunpack.c.l.b16 %v1326
          %v1551 = vunpack.c.l.b16 %v1327
          %v1552 = vunpack.c.l.b16 %v1328
          %v1553 = vunpack.c.l.b16 %v1329
          %v1554 = vunpack.c.l.b16 %v1330
          %v1555 = vunpack.c.l.b16 %v1331
          %v1556 = vunpack.c.l.b16 %v1332
          %v1557 = vunpack.c.l.b16 %v1333
          %v1558 = vunpack.c.l.b16 %v1334
          %v1559 = vunpack.c.l.b16 %v1335
          %v1560 = vunpack.c.l.b16 %v1336
          %v1561 = vunpack.c.l.b16 %v1337
          %v1562 = vunpack.c.l.b16 %v1338
          %v1563 = vunpack.c.l.b16 %v1339
          %v1564 = vunpack.c.l.b16 %v1340
          %v1565 = vunpack.c.l.b16 %v1341
          %v1566 = vunpack.c.l.b16 %v1342
          %v1567 = vunpack.c.l.b16 %v1343
          %v1568 = vunpack.c.l.b16 %v1344
          %v1569 = vunpack.c.l.b16 %v1345
          %v1570 = vunpack.c.l.b16 %v1346
          %v1571 = vunpack.c.l.b16 %v1347
          %v1572 = vunpack.c.l.b16 %v1348
          %v1573 = vunpack.c.l.b16 %v1349
          %v1574 = vunpack.c.l.b16 %v1350
          %v1575 = vunpack.c.l.b16 %v1351
          %v1576 = vunpack.c.l.b16 %v1352
          %v1577 = vunpack.c.l.b16 %v1353
          %v1578 = vunpack.c.l.b16 %v1354
          %v1579 = vunpack.c.l.b16 %v1355
          %v1580 = vunpack.c.l.b16 %v1356
          %v1581 = vunpack.c.l.b16 %v1357
          %v1582 = vunpack.c.l.b16 %v1358
          %v1583 = vpack.c.b16 %v1536, %v1535
          %v1584 = vpack.c.b16 %v1538, %v1537
          %v1585 = vpack.c.b16 %v1540, %v1539
          %v1586 = vpack.c.b16 %v1542, %v1541
          %v1587 = vpack.c.b16 %v1544, %v1543
          %v1588 = vpack.c.b16 %v1546, %v1545
          %v1589 = vpack.c.b16 %v1548, %v1547
          %v1590 = vpack.c.b16 %v1550, %v1549
          %v1591 = vpack.c.b16 %v1552, %v1551
          %v1592 = vpack.c.b16 %v1554, %v1553
          %v1593 = vpack.c.b16 %v1556, %v1555
          %v1594 = vpack.c.b16 %v1558, %v1557
          %v1595 = vpack.c.b16 %v1560, %v1559
          %v1596 = vpack.c.b16 %v1562, %v1561
          %v1597 = vpack.c.b16 %v1564, %v1563
          %v1598 = vpack.c.b16 %v1566, %v1565
          %v1599 = vpack.c.b16 %v1568, %v1567
          %v1600 = vpack.c.b16 %v1570, %v1569
          %v1601 = vpack.c.b16 %v1572, %v1571
          %v1602 = vpack.c.b16 %v1574, %v1573
          %v1603 = vpack.c.b16 %v1576, %v1575
          %v1604 = vpack.c.b16 %v1578, %v1577
          %v1605 = vpack.c.b16 %v1580, %v1579
          %v1606 = vpack.c.b16 %v1582, %v1581
          %1631 = vmatprep.subr.bf16.mxu0 0
          %1632 = vmatpush1.bf16.msra.mxu0 %v1590
          %1633 = vmatprep.subr.bf16.mxu0 0
          %1634 = vmatpush1.bf16.msra.mxu0 %v1589
          %1635 = vmatprep.subr.bf16.mxu0 0
          %1636 = vmatpush1.bf16.msra.mxu0 %v1588
          %1637 = vmatprep.subr.bf16.mxu0 0
          %1638 = vmatpush1.bf16.msra.mxu0 %v1587
          %1639 = vmatprep.subr.bf16.mxu0 0
          %1640 = vmatpush1.bf16.msra.mxu0 %v1586
          %1641 = vmatprep.subr.bf16.mxu0 0
          %1642 = vmatpush1.bf16.msra.mxu0 %v1585
          %1643 = vmatprep.subr.bf16.mxu0 0
          %1644 = vmatpush1.bf16.msra.mxu0 %v1584
          %1645 = vmatprep.subr.bf16.mxu0 0
          %1646 = vmatpush1.bf16.msra.mxu0 %v1583
          %1647 = vmatprep.subr.bf16.mxu0 0
          %1648 = vmatpush2.bf16.msra.mxu0 %v1598
          %1649 = vmatprep.subr.bf16.mxu0 0
          %1650 = vmatpush2.bf16.msra.mxu0 %v1597
          %1651 = vmatprep.subr.bf16.mxu0 0
          %1652 = vmatpush2.bf16.msra.mxu0 %v1596
          %1653 = vmatprep.subr.bf16.mxu0 0
          %1654 = vmatpush2.bf16.msra.mxu0 %v1595
          %1655 = vmatprep.subr.bf16.mxu0 0
          %1656 = vmatpush2.bf16.msra.mxu0 %v1594
          %1657 = vmatprep.subr.bf16.mxu0 0
          %1658 = vmatpush2.bf16.msra.mxu0 %v1593
          %1659 = vmatprep.subr.bf16.mxu0 0
          %1660 = vmatpush2.bf16.msra.mxu0 %v1592
          %1661 = vmatprep.subr.bf16.mxu0 0
          %1662 = vmatpush2.bf16.msra.mxu0 %v1591
          %1663 = vmatprep.mubr.bf16.mxu0 %v1440
          %1664 = vmatmul.mubr.bf16.gmra.mxu0 %v1439
          %v1665 = vpop.f32.mrf.mxu0
          %v1666 = vadd.f32 0.0, %v1665
          %v1667 = vpop.f32.mrf.mxu0
          %v1668 = vpop.f32.mrf.mxu0
          %v1669 = vadd.f32 0.0, %v1668
          %v1670 = vpop.f32.mrf.mxu0
          %1671 = vmatprep.mubr.bf16.mxu0 %v1443
          %1672 = vmatmul.mubr.bf16.gmra.mxu0 %v1442
          %v1673 = vpop.f32.mrf.mxu0
          %v1674 = vadd.f32 0.0, %v1673
          %v1675 = vpop.f32.mrf.mxu0
          %v1676 = vpop.f32.mrf.mxu0
          %v1677 = vadd.f32 0.0, %v1676
          %v1678 = vpop.f32.mrf.mxu0
          %1679 = vmatprep.mubr.bf16.mxu0 %v1446
          %1680 = vmatmul.mubr.bf16.gmra.mxu0 %v1445
          %v1681 = vpop.f32.mrf.mxu0
          %v1682 = vadd.f32 0.0, %v1681
          %v1683 = vpop.f32.mrf.mxu0
          %v1684 = vpop.f32.mrf.mxu0
          %v1685 = vadd.f32 0.0, %v1684
          %v1686 = vpop.f32.mrf.mxu0
          %1687 = vmatprep.mubr.bf16.mxu0 %v1449
          %1688 = vmatmul.mubr.bf16.gmra.mxu0 %v1448
          %v1689 = vpop.f32.mrf.mxu0
          %v1690 = vadd.f32 0.0, %v1689
          %v1691 = vpop.f32.mrf.mxu0
          %v1692 = vpop.f32.mrf.mxu0
          %v1693 = vadd.f32 0.0, %v1692
          %v1694 = vpop.f32.mrf.mxu0
          %1695 = vmatprep.mubr.bf16.mxu0 %v1452
          %1696 = vmatmul.mubr.bf16.gmra.mxu0 %v1451
          %v1697 = vpop.f32.mrf.mxu0
          %v1698 = vadd.f32 0.0, %v1697
          %v1699 = vpop.f32.mrf.mxu0
          %v1700 = vpop.f32.mrf.mxu0
          %v1701 = vadd.f32 0.0, %v1700
          %v1702 = vpop.f32.mrf.mxu0
          %1703 = vmatprep.mubr.bf16.mxu0 %v1455
          %1704 = vmatmul.mubr.bf16.gmra.mxu0 %v1454
          %v1705 = vpop.f32.mrf.mxu0
          %v1706 = vadd.f32 0.0, %v1705
          %v1707 = vpop.f32.mrf.mxu0
          %v1708 = vpop.f32.mrf.mxu0
          %v1709 = vadd.f32 0.0, %v1708
          %v1710 = vpop.f32.mrf.mxu0
          %1711 = vmatprep.mubr.bf16.mxu0 %v1458
          %1712 = vmatmul.mubr.bf16.gmra.mxu0 %v1457
          %v1713 = vpop.f32.mrf.mxu0
          %v1714 = vadd.f32 0.0, %v1713
          %v1715 = vpop.f32.mrf.mxu0
          %v1716 = vpop.f32.mrf.mxu0
          %v1717 = vadd.f32 0.0, %v1716
          %v1718 = vpop.f32.mrf.mxu0
          %1719 = vmatprep.mubr.bf16.mxu0 %v1461
          %1720 = vmatmul.mubr.bf16.gmra.mxu0 %v1460
          %v1721 = vpop.f32.mrf.mxu0
          %v1722 = vadd.f32 0.0, %v1721
          %v1723 = vpop.f32.mrf.mxu0
          %v1724 = vpop.f32.mrf.mxu0
          %v1725 = vadd.f32 0.0, %v1724
          %v1726 = vpop.f32.mrf.mxu0
          %1727 = vdwg.mxu0
          %1728 = vmatprep.subr.bf16.mxu0 0
          %1729 = vmatpush1.bf16.msra.mxu0 %v1606
          %1730 = vmatprep.subr.bf16.mxu0 0
          %1731 = vmatpush1.bf16.msra.mxu0 %v1605
          %1732 = vmatprep.subr.bf16.mxu0 0
          %1733 = vmatpush1.bf16.msra.mxu0 %v1604
          %1734 = vmatprep.subr.bf16.mxu0 0
          %1735 = vmatpush1.bf16.msra.mxu0 %v1603
          %1736 = vmatprep.subr.bf16.mxu0 0
          %1737 = vmatpush1.bf16.msra.mxu0 %v1602
          %1738 = vmatprep.subr.bf16.mxu0 0
          %1739 = vmatpush1.bf16.msra.mxu0 %v1601
          %1740 = vmatprep.subr.bf16.mxu0 0
          %1741 = vmatpush1.bf16.msra.mxu0 %v1600
          %1742 = vmatprep.subr.bf16.mxu0 0
          %1743 = vmatpush1.bf16.msra.mxu0 %v1599
          %1744 = vmatprep.subr.bf16.mxu0 0
          %1745 = vmatpush2.bf16.msra.mxu0 0
          %1746 = vmatprep.subr.bf16.mxu0 0
          %1747 = vmatpush2.bf16.msra.mxu0 0
          %1748 = vmatprep.subr.bf16.mxu0 0
          %1749 = vmatpush2.bf16.msra.mxu0 0
          %1750 = vmatprep.subr.bf16.mxu0 0
          %1751 = vmatpush2.bf16.msra.mxu0 0
          %1752 = vmatprep.subr.bf16.mxu0 0
          %1753 = vmatpush2.bf16.msra.mxu0 0
          %1754 = vmatprep.subr.bf16.mxu0 0
          %1755 = vmatpush2.bf16.msra.mxu0 0
          %1756 = vmatprep.subr.bf16.mxu0 0
          %1757 = vmatpush2.bf16.msra.mxu0 0
          %1758 = vmatprep.subr.bf16.mxu0 0
          %1759 = vmatpush2.bf16.msra.mxu0 0
          %1760 = vmatprep.mubr.bf16.mxu0 0
          %1761 = vmatmul.mubr.bf16.gmra.mxu0 %v1441
          %v1762 = vpop.f32.mrf.mxu0
          %v1763 = vadd.f32 %v1666, %v1762
          %v1764 = vpop.f32.mrf.mxu0
          %v1765 = vpop.f32.mrf.mxu0
          %v1766 = vadd.f32 %v1669, %v1765
          %v1767 = vpop.f32.mrf.mxu0
          %1768 = vmatprep.mubr.bf16.mxu0 0
          %1769 = vmatmul.mubr.bf16.gmra.mxu0 %v1444
          %v1770 = vpop.f32.mrf.mxu0
          %v1771 = vadd.f32 %v1674, %v1770
          %v1772 = vpop.f32.mrf.mxu0
          %v1773 = vpop.f32.mrf.mxu0
          %v1774 = vadd.f32 %v1677, %v1773
          %v1775 = vpop.f32.mrf.mxu0
          %1776 = vmatprep.mubr.bf16.mxu0 0
          %1777 = vmatmul.mubr.bf16.gmra.mxu0 %v1447
          %v1778 = vpop.f32.mrf.mxu0
          %v1779 = vadd.f32 %v1682, %v1778
          %v1780 = vpop.f32.mrf.mxu0
          %v1781 = vpop.f32.mrf.mxu0
          %v1782 = vadd.f32 %v1685, %v1781
          %v1783 = vpop.f32.mrf.mxu0
          %1784 = vmatprep.mubr.bf16.mxu0 0
          %1785 = vmatmul.mubr.bf16.gmra.mxu0 %v1450
          %v1786 = vpop.f32.mrf.mxu0
          %v1787 = vadd.f32 %v1690, %v1786
          %v1788 = vpop.f32.mrf.mxu0
          %v1789 = vpop.f32.mrf.mxu0
          %v1790 = vadd.f32 %v1693, %v1789
          %v1791 = vpop.f32.mrf.mxu0
          %1792 = vmatprep.mubr.bf16.mxu0 0
          %1793 = vmatmul.mubr.bf16.gmra.mxu0 %v1453
          %v1794 = vpop.f32.mrf.mxu0
          %v1795 = vadd.f32 %v1698, %v1794
          %v1796 = vpop.f32.mrf.mxu0
          %v1797 = vpop.f32.mrf.mxu0
          %v1798 = vadd.f32 %v1701, %v1797
          %v1799 = vpop.f32.mrf.mxu0
          %1800 = vmatprep.mubr.bf16.mxu0 0
          %1801 = vmatmul.mubr.bf16.gmra.mxu0 %v1456
          %v1802 = vpop.f32.mrf.mxu0
          %v1803 = vadd.f32 %v1706, %v1802
          %v1804 = vpop.f32.mrf.mxu0
          %v1805 = vpop.f32.mrf.mxu0
          %v1806 = vadd.f32 %v1709, %v1805
          %v1807 = vpop.f32.mrf.mxu0
          %1808 = vmatprep.mubr.bf16.mxu0 0
          %1809 = vmatmul.mubr.bf16.gmra.mxu0 %v1459
          %v1810 = vpop.f32.mrf.mxu0
          %v1811 = vadd.f32 %v1714, %v1810
          %v1812 = vpop.f32.mrf.mxu0
          %v1813 = vpop.f32.mrf.mxu0
          %v1814 = vadd.f32 %v1717, %v1813
          %v1815 = vpop.f32.mrf.mxu0
          %1816 = vmatprep.mubr.bf16.mxu0 0
          %1817 = vmatmul.mubr.bf16.gmra.mxu0 %v1462
          %v1818 = vpop.f32.mrf.mxu0
          %v1819 = vadd.f32 %v1722, %v1818
          %v1820 = vpop.f32.mrf.mxu0
          %v1821 = vpop.f32.mrf.mxu0
          %v1822 = vadd.f32 %v1725, %v1821
          %v1823 = vpop.f32.mrf.mxu0
          %1824 = vdwg.mxu0
          %v1857 = vunpack.c.l.b16 %v1194
          %v1858 = vunpack.c.h.b16 %v1194
          %v1859 = vunpack.c.l.b16 %v1195
          %v1860 = vunpack.c.l.b16 %v1196
          %v1861 = vunpack.c.h.b16 %v1196
          %v1862 = vunpack.c.l.b16 %v1197
          %v1863 = vunpack.c.l.b16 %v1198
          %v1864 = vunpack.c.h.b16 %v1198
          %v1865 = vunpack.c.l.b16 %v1199
          %v1866 = vunpack.c.l.b16 %v1200
          %v1867 = vunpack.c.h.b16 %v1200
          %v1868 = vunpack.c.l.b16 %v1201
          %v1869 = vunpack.c.l.b16 %v1202
          %v1870 = vunpack.c.h.b16 %v1202
          %v1871 = vunpack.c.l.b16 %v1203
          %v1872 = vunpack.c.l.b16 %v1204
          %v1873 = vunpack.c.h.b16 %v1204
          %v1874 = vunpack.c.l.b16 %v1205
          %v1875 = vunpack.c.l.b16 %v1206
          %v1876 = vunpack.c.h.b16 %v1206
          %v1877 = vunpack.c.l.b16 %v1207
          %v1878 = vunpack.c.l.b16 %v1208
          %v1879 = vunpack.c.h.b16 %v1208
          %v1880 = vunpack.c.l.b16 %v1209
          %v1881 = vunpack.c.l.b16 %v1210
          %v1882 = vunpack.c.h.b16 %v1210
          %v1883 = vunpack.c.l.b16 %v1211
          %v1884 = vunpack.c.l.b16 %v1212
          %v1885 = vunpack.c.h.b16 %v1212
          %v1886 = vunpack.c.l.b16 %v1213
          %v1887 = vunpack.c.l.b16 %v1214
          %v1888 = vunpack.c.h.b16 %v1214
          %v1889 = vunpack.c.l.b16 %v1215
          %v1890 = vunpack.c.l.b16 %v1216
          %v1891 = vunpack.c.h.b16 %v1216
          %v1892 = vunpack.c.l.b16 %v1217
          %v1893 = vunpack.c.l.b16 %v1218
          %v1894 = vunpack.c.h.b16 %v1218
          %v1895 = vunpack.c.l.b16 %v1219
          %v1896 = vunpack.c.l.b16 %v1220
          %v1897 = vunpack.c.h.b16 %v1220
          %v1898 = vunpack.c.l.b16 %v1221
          %v1899 = vunpack.c.l.b16 %v1222
          %v1900 = vunpack.c.h.b16 %v1222
          %v1901 = vunpack.c.l.b16 %v1223
          %v1902 = vunpack.c.l.b16 %v1224
          %v1903 = vunpack.c.h.b16 %v1224
          %v1904 = vunpack.c.l.b16 %v1225
          %v1905 = vpack.c.b16 %v1860, %v1857
          %v1906 = vpack.c.b16 %v1861, %v1858
          %v1907 = vpack.c.b16 %v1862, %v1859
          %v1908 = vpack.c.b16 %v1866, %v1863
          %v1909 = vpack.c.b16 %v1867, %v1864
          %v1910 = vpack.c.b16 %v1868, %v1865
          %v1911 = vpack.c.b16 %v1872, %v1869
          %v1912 = vpack.c.b16 %v1873, %v1870
          %v1913 = vpack.c.b16 %v1874, %v1871
          %v1914 = vpack.c.b16 %v1878, %v1875
          %v1915 = vpack.c.b16 %v1879, %v1876
          %v1916 = vpack.c.b16 %v1880, %v1877
          %v1917 = vpack.c.b16 %v1884, %v1881
          %v1918 = vpack.c.b16 %v1885, %v1882
          %v1919 = vpack.c.b16 %v1886, %v1883
          %v1920 = vpack.c.b16 %v1890, %v1887
          %v1921 = vpack.c.b16 %v1891, %v1888
          %v1922 = vpack.c.b16 %v1892, %v1889
          %v1923 = vpack.c.b16 %v1896, %v1893
          %v1924 = vpack.c.b16 %v1897, %v1894
          %v1925 = vpack.c.b16 %v1898, %v1895
          %v1926 = vpack.c.b16 %v1902, %v1899
          %v1927 = vpack.c.b16 %v1903, %v1900
          %v1928 = vpack.c.b16 %v1904, %v1901
          %v2001 = vunpack.c.l.b16 %v1226
          %v2002 = vunpack.c.l.b16 %v1227
          %v2003 = vunpack.c.l.b16 %v1228
          %v2004 = vunpack.c.l.b16 %v1229
          %v2005 = vunpack.c.l.b16 %v1230
          %v2006 = vunpack.c.l.b16 %v1231
          %v2007 = vunpack.c.l.b16 %v1232
          %v2008 = vunpack.c.l.b16 %v1233
          %v2009 = vunpack.c.l.b16 %v1234
          %v2010 = vunpack.c.l.b16 %v1235
          %v2011 = vunpack.c.l.b16 %v1236
          %v2012 = vunpack.c.l.b16 %v1237
          %v2013 = vunpack.c.l.b16 %v1238
          %v2014 = vunpack.c.l.b16 %v1239
          %v2015 = vunpack.c.l.b16 %v1240
          %v2016 = vunpack.c.l.b16 %v1241
          %v2017 = vunpack.c.l.b16 %v1242
          %v2018 = vunpack.c.l.b16 %v1243
          %v2019 = vunpack.c.l.b16 %v1244
          %v2020 = vunpack.c.l.b16 %v1245
          %v2021 = vunpack.c.l.b16 %v1246
          %v2022 = vunpack.c.l.b16 %v1247
          %v2023 = vunpack.c.l.b16 %v1248
          %v2024 = vunpack.c.l.b16 %v1249
          %v2025 = vunpack.c.l.b16 %v1250
          %v2026 = vunpack.c.l.b16 %v1251
          %v2027 = vunpack.c.l.b16 %v1252
          %v2028 = vunpack.c.l.b16 %v1253
          %v2029 = vunpack.c.l.b16 %v1254
          %v2030 = vunpack.c.l.b16 %v1255
          %v2031 = vunpack.c.l.b16 %v1256
          %v2032 = vunpack.c.l.b16 %v1257
          %v2033 = vunpack.c.l.b16 %v1258
          %v2034 = vunpack.c.l.b16 %v1259
          %v2035 = vunpack.c.l.b16 %v1260
          %v2036 = vunpack.c.l.b16 %v1261
          %v2037 = vunpack.c.l.b16 %v1262
          %v2038 = vunpack.c.l.b16 %v1263
          %v2039 = vunpack.c.l.b16 %v1264
          %v2040 = vunpack.c.l.b16 %v1265
          %v2041 = vunpack.c.l.b16 %v1266
          %v2042 = vunpack.c.l.b16 %v1267
          %v2043 = vunpack.c.l.b16 %v1268
          %v2044 = vunpack.c.l.b16 %v1269
          %v2045 = vunpack.c.l.b16 %v1270
          %v2046 = vunpack.c.l.b16 %v1271
          %v2047 = vunpack.c.l.b16 %v1272
          %v2048 = vunpack.c.l.b16 %v1273
          %v2049 = vpack.c.b16 %v2002, %v2001
          %v2050 = vpack.c.b16 %v2004, %v2003
          %v2051 = vpack.c.b16 %v2006, %v2005
          %v2052 = vpack.c.b16 %v2008, %v2007
          %v2053 = vpack.c.b16 %v2010, %v2009
          %v2054 = vpack.c.b16 %v2012, %v2011
          %v2055 = vpack.c.b16 %v2014, %v2013
          %v2056 = vpack.c.b16 %v2016, %v2015
          %v2057 = vpack.c.b16 %v2018, %v2017
          %v2058 = vpack.c.b16 %v2020, %v2019
          %v2059 = vpack.c.b16 %v2022, %v2021
          %v2060 = vpack.c.b16 %v2024, %v2023
          %v2061 = vpack.c.b16 %v2026, %v2025
          %v2062 = vpack.c.b16 %v2028, %v2027
          %v2063 = vpack.c.b16 %v2030, %v2029
          %v2064 = vpack.c.b16 %v2032, %v2031
          %v2065 = vpack.c.b16 %v2034, %v2033
          %v2066 = vpack.c.b16 %v2036, %v2035
          %v2067 = vpack.c.b16 %v2038, %v2037
          %v2068 = vpack.c.b16 %v2040, %v2039
          %v2069 = vpack.c.b16 %v2042, %v2041
          %v2070 = vpack.c.b16 %v2044, %v2043
          %v2071 = vpack.c.b16 %v2046, %v2045
          %v2072 = vpack.c.b16 %v2048, %v2047
          %2097 = vmatprep.subr.bf16.mxu0 0
          %2098 = vmatpush1.bf16.msra.mxu0 %v2056
          %2099 = vmatprep.subr.bf16.mxu0 0
          %2100 = vmatpush1.bf16.msra.mxu0 %v2055
          %2101 = vmatprep.subr.bf16.mxu0 0
          %2102 = vmatpush1.bf16.msra.mxu0 %v2054
          %2103 = vmatprep.subr.bf16.mxu0 0
          %2104 = vmatpush1.bf16.msra.mxu0 %v2053
          %2105 = vmatprep.subr.bf16.mxu0 0
          %2106 = vmatpush1.bf16.msra.mxu0 %v2052
          %2107 = vmatprep.subr.bf16.mxu0 0
          %2108 = vmatpush1.bf16.msra.mxu0 %v2051
          %2109 = vmatprep.subr.bf16.mxu0 0
          %2110 = vmatpush1.bf16.msra.mxu0 %v2050
          %2111 = vmatprep.subr.bf16.mxu0 0
          %2112 = vmatpush1.bf16.msra.mxu0 %v2049
          %2113 = vmatprep.subr.bf16.mxu0 0
          %2114 = vmatpush2.bf16.msra.mxu0 %v2064
          %2115 = vmatprep.subr.bf16.mxu0 0
          %2116 = vmatpush2.bf16.msra.mxu0 %v2063
          %2117 = vmatprep.subr.bf16.mxu0 0
          %2118 = vmatpush2.bf16.msra.mxu0 %v2062
          %2119 = vmatprep.subr.bf16.mxu0 0
          %2120 = vmatpush2.bf16.msra.mxu0 %v2061
          %2121 = vmatprep.subr.bf16.mxu0 0
          %2122 = vmatpush2.bf16.msra.mxu0 %v2060
          %2123 = vmatprep.subr.bf16.mxu0 0
          %2124 = vmatpush2.bf16.msra.mxu0 %v2059
          %2125 = vmatprep.subr.bf16.mxu0 0
          %2126 = vmatpush2.bf16.msra.mxu0 %v2058
          %2127 = vmatprep.subr.bf16.mxu0 0
          %2128 = vmatpush2.bf16.msra.mxu0 %v2057
          %2129 = vmatprep.mubr.bf16.mxu0 %v1906
          %2130 = vmatmul.mubr.bf16.gmra.mxu0 %v1905
          %v2131 = vpop.f32.mrf.mxu0
          %v2132 = vadd.f32 %v1763, %v2131
          %v2133 = vpop.f32.mrf.mxu0
          %v2134 = vpop.f32.mrf.mxu0
          %v2135 = vadd.f32 %v1766, %v2134
          %v2136 = vpop.f32.mrf.mxu0
          %2137 = vmatprep.mubr.bf16.mxu0 %v1909
          %2138 = vmatmul.mubr.bf16.gmra.mxu0 %v1908
          %v2139 = vpop.f32.mrf.mxu0
          %v2140 = vadd.f32 %v1771, %v2139
          %v2141 = vpop.f32.mrf.mxu0
          %v2142 = vpop.f32.mrf.mxu0
          %v2143 = vadd.f32 %v1774, %v2142
          %v2144 = vpop.f32.mrf.mxu0
          %2145 = vmatprep.mubr.bf16.mxu0 %v1912
          %2146 = vmatmul.mubr.bf16.gmra.mxu0 %v1911
          %v2147 = vpop.f32.mrf.mxu0
          %v2148 = vadd.f32 %v1779, %v2147
          %v2149 = vpop.f32.mrf.mxu0
          %v2150 = vpop.f32.mrf.mxu0
          %v2151 = vadd.f32 %v1782, %v2150
          %v2152 = vpop.f32.mrf.mxu0
          %2153 = vmatprep.mubr.bf16.mxu0 %v1915
          %2154 = vmatmul.mubr.bf16.gmra.mxu0 %v1914
          %v2155 = vpop.f32.mrf.mxu0
          %v2156 = vadd.f32 %v1787, %v2155
          %v2157 = vpop.f32.mrf.mxu0
          %v2158 = vpop.f32.mrf.mxu0
          %v2159 = vadd.f32 %v1790, %v2158
          %v2160 = vpop.f32.mrf.mxu0
          %2161 = vmatprep.mubr.bf16.mxu0 %v1918
          %2162 = vmatmul.mubr.bf16.gmra.mxu0 %v1917
          %v2163 = vpop.f32.mrf.mxu0
          %v2164 = vadd.f32 %v1795, %v2163
          %v2165 = vpop.f32.mrf.mxu0
          %v2166 = vpop.f32.mrf.mxu0
          %v2167 = vadd.f32 %v1798, %v2166
          %v2168 = vpop.f32.mrf.mxu0
          %2169 = vmatprep.mubr.bf16.mxu0 %v1921
          %2170 = vmatmul.mubr.bf16.gmra.mxu0 %v1920
          %v2171 = vpop.f32.mrf.mxu0
          %v2172 = vadd.f32 %v1803, %v2171
          %v2173 = vpop.f32.mrf.mxu0
          %v2174 = vpop.f32.mrf.mxu0
          %v2175 = vadd.f32 %v1806, %v2174
          %v2176 = vpop.f32.mrf.mxu0
          %2177 = vmatprep.mubr.bf16.mxu0 %v1924
          %2178 = vmatmul.mubr.bf16.gmra.mxu0 %v1923
          %v2179 = vpop.f32.mrf.mxu0
          %v2180 = vadd.f32 %v1811, %v2179
          %v2181 = vpop.f32.mrf.mxu0
          %v2182 = vpop.f32.mrf.mxu0
          %v2183 = vadd.f32 %v1814, %v2182
          %v2184 = vpop.f32.mrf.mxu0
          %2185 = vmatprep.mubr.bf16.mxu0 %v1927
          %2186 = vmatmul.mubr.bf16.gmra.mxu0 %v1926
          %v2187 = vpop.f32.mrf.mxu0
          %v2188 = vadd.f32 %v1819, %v2187
          %v2189 = vpop.f32.mrf.mxu0
          %v2190 = vpop.f32.mrf.mxu0
          %v2191 = vadd.f32 %v1822, %v2190
          %v2192 = vpop.f32.mrf.mxu0
          %2193 = vdwg.mxu0
          %2194 = vmatprep.subr.bf16.mxu0 0
          %2195 = vmatpush1.bf16.msra.mxu0 %v2072
          %2196 = vmatprep.subr.bf16.mxu0 0
          %2197 = vmatpush1.bf16.msra.mxu0 %v2071
          %2198 = vmatprep.subr.bf16.mxu0 0
          %2199 = vmatpush1.bf16.msra.mxu0 %v2070
          %2200 = vmatprep.subr.bf16.mxu0 0
          %2201 = vmatpush1.bf16.msra.mxu0 %v2069
          %2202 = vmatprep.subr.bf16.mxu0 0
          %2203 = vmatpush1.bf16.msra.mxu0 %v2068
          %2204 = vmatprep.subr.bf16.mxu0 0
          %2205 = vmatpush1.bf16.msra.mxu0 %v2067
          %2206 = vmatprep.subr.bf16.mxu0 0
          %2207 = vmatpush1.bf16.msra.mxu0 %v2066
          %2208 = vmatprep.subr.bf16.mxu0 0
          %2209 = vmatpush1.bf16.msra.mxu0 %v2065
          %2210 = vmatprep.subr.bf16.mxu0 0
          %2211 = vmatpush2.bf16.msra.mxu0 0
          %2212 = vmatprep.subr.bf16.mxu0 0
          %2213 = vmatpush2.bf16.msra.mxu0 0
          %2214 = vmatprep.subr.bf16.mxu0 0
          %2215 = vmatpush2.bf16.msra.mxu0 0
          %2216 = vmatprep.subr.bf16.mxu0 0
          %2217 = vmatpush2.bf16.msra.mxu0 0
          %2218 = vmatprep.subr.bf16.mxu0 0
          %2219 = vmatpush2.bf16.msra.mxu0 0
          %2220 = vmatprep.subr.bf16.mxu0 0
          %2221 = vmatpush2.bf16.msra.mxu0 0
          %2222 = vmatprep.subr.bf16.mxu0 0
          %2223 = vmatpush2.bf16.msra.mxu0 0
          %2224 = vmatprep.subr.bf16.mxu0 0
          %2225 = vmatpush2.bf16.msra.mxu0 0
          %2226 = vmatprep.mubr.bf16.mxu0 0
          %2227 = vmatmul.mubr.bf16.gmra.mxu0 %v1907
          %v2228 = vpop.f32.mrf.mxu0
          %v2229 = vadd.f32 %v2132, %v2228
          %v2230 = vpop.f32.mrf.mxu0
          %v2231 = vpop.f32.mrf.mxu0
          %v2232 = vadd.f32 %v2135, %v2231
          %v2233 = vpop.f32.mrf.mxu0
          %2234 = vmatprep.mubr.bf16.mxu0 0
          %2235 = vmatmul.mubr.bf16.gmra.mxu0 %v1910
          %v2236 = vpop.f32.mrf.mxu0
          %v2237 = vadd.f32 %v2140, %v2236
          %v2238 = vpop.f32.mrf.mxu0
          %v2239 = vpop.f32.mrf.mxu0
          %v2240 = vadd.f32 %v2143, %v2239
          %v2241 = vpop.f32.mrf.mxu0
          %2242 = vmatprep.mubr.bf16.mxu0 0
          %2243 = vmatmul.mubr.bf16.gmra.mxu0 %v1913
          %v2244 = vpop.f32.mrf.mxu0
          %v2245 = vadd.f32 %v2148, %v2244
          %v2246 = vpop.f32.mrf.mxu0
          %v2247 = vpop.f32.mrf.mxu0
          %v2248 = vadd.f32 %v2151, %v2247
          %v2249 = vpop.f32.mrf.mxu0
          %2250 = vmatprep.mubr.bf16.mxu0 0
          %2251 = vmatmul.mubr.bf16.gmra.mxu0 %v1916
          %v2252 = vpop.f32.mrf.mxu0
          %v2253 = vadd.f32 %v2156, %v2252
          %v2254 = vpop.f32.mrf.mxu0
          %v2255 = vpop.f32.mrf.mxu0
          %v2256 = vadd.f32 %v2159, %v2255
          %v2257 = vpop.f32.mrf.mxu0
          %2258 = vmatprep.mubr.bf16.mxu0 0
          %2259 = vmatmul.mubr.bf16.gmra.mxu0 %v1919
          %v2260 = vpop.f32.mrf.mxu0
          %v2261 = vadd.f32 %v2164, %v2260
          %v2262 = vpop.f32.mrf.mxu0
          %v2263 = vpop.f32.mrf.mxu0
          %v2264 = vadd.f32 %v2167, %v2263
          %v2265 = vpop.f32.mrf.mxu0
          %2266 = vmatprep.mubr.bf16.mxu0 0
          %2267 = vmatmul.mubr.bf16.gmra.mxu0 %v1922
          %v2268 = vpop.f32.mrf.mxu0
          %v2269 = vadd.f32 %v2172, %v2268
          %v2270 = vpop.f32.mrf.mxu0
          %v2271 = vpop.f32.mrf.mxu0
          %v2272 = vadd.f32 %v2175, %v2271
          %v2273 = vpop.f32.mrf.mxu0
          %2274 = vmatprep.mubr.bf16.mxu0 0
          %2275 = vmatmul.mubr.bf16.gmra.mxu0 %v1925
          %v2276 = vpop.f32.mrf.mxu0
          %v2277 = vadd.f32 %v2180, %v2276
          %v2278 = vpop.f32.mrf.mxu0
          %v2279 = vpop.f32.mrf.mxu0
          %v2280 = vadd.f32 %v2183, %v2279
          %v2281 = vpop.f32.mrf.mxu0
          %2282 = vmatprep.mubr.bf16.mxu0 0
          %2283 = vmatmul.mubr.bf16.gmra.mxu0 %v1928
          %v2284 = vpop.f32.mrf.mxu0
          %v2285 = vadd.f32 %v2188, %v2284
          %v2286 = vpop.f32.mrf.mxu0
          %v2287 = vpop.f32.mrf.mxu0
          %v2288 = vadd.f32 %v2191, %v2287
          %v2289 = vpop.f32.mrf.mxu0
          %2290 = vdwg.mxu0
          %s2291 = sadd.s32 %s1190, 2
          %s2292 = smul.u32 %s2291, 6
          %s2293 = smul.addr %s2292, 4
          %s2294 = scalar_lea.vmem [#allocation2], %s2293
          %v2295 = vld [vmem:[%s2294] sm:$0xff]
          %v2296 = vld [vmem:[%s2294 + $0x8] sm:$0xf]
          %v2297 = vld [vmem:[%s2294 + $0xc] sm:$0xff]
          %v2298 = vld [vmem:[%s2294 + $0x14] sm:$0xf]
          %v2299 = vld [vmem:[%s2294 + $0x18] sm:$0xff]
          %v2300 = vld [vmem:[%s2294 + $0x20] sm:$0xf]
          %v2301 = vld [vmem:[%s2294 + $0x24] sm:$0xff]
          %v2302 = vld [vmem:[%s2294 + $0x2c] sm:$0xf]
          %v2303 = vld [vmem:[%s2294 + $0x30] sm:$0xff]
          %v2304 = vld [vmem:[%s2294 + $0x38] sm:$0xf]
          %v2305 = vld [vmem:[%s2294 + $0x3c] sm:$0xff]
          %v2306 = vld [vmem:[%s2294 + $0x44] sm:$0xf]
          %v2307 = vld [vmem:[%s2294 + $0x48] sm:$0xff]
          %v2308 = vld [vmem:[%s2294 + $0x50] sm:$0xf]
          %v2309 = vld [vmem:[%s2294 + $0x54] sm:$0xff]
          %v2310 = vld [vmem:[%s2294 + $0x5c] sm:$0xf]
          %v2311 = vld [vmem:[%s2294 + $0x60] sm:$0xff]
          %v2312 = vld [vmem:[%s2294 + $0x68] sm:$0xf]
          %v2313 = vld [vmem:[%s2294 + $0x6c] sm:$0xff]
          %v2314 = vld [vmem:[%s2294 + $0x74] sm:$0xf]
          %v2315 = vld [vmem:[%s2294 + $0x78] sm:$0xff]
          %v2316 = vld [vmem:[%s2294 + $0x80] sm:$0xf]
          %v2317 = vld [vmem:[%s2294 + $0x84] sm:$0xff]
          %v2318 = vld [vmem:[%s2294 + $0x8c] sm:$0xf]
          %v2319 = vld [vmem:[%s2294 + $0x90] sm:$0xff]
          %v2320 = vld [vmem:[%s2294 + $0x98] sm:$0xf]
          %v2321 = vld [vmem:[%s2294 + $0x9c] sm:$0xff]
          %v2322 = vld [vmem:[%s2294 + $0xa4] sm:$0xf]
          %v2323 = vld [vmem:[%s2294 + $0xa8] sm:$0xff]
          %v2324 = vld [vmem:[%s2294 + $0xb0] sm:$0xf]
          %v2325 = vld [vmem:[%s2294 + $0xb4] sm:$0xff]
          %v2326 = vld [vmem:[%s2294 + $0xbc] sm:$0xf]
          %s2327 = scalar_lea.vmem [#allocation9], 384
          %v2328 = vld [vmem:[%s2327] sm:$0xf]
          %v2329 = vld [vmem:[%s2327 + $0x4] sm:$0xf]
          %v2330 = vld [vmem:[%s2327 + $0x8] sm:$0xf]
          %v2331 = vld [vmem:[%s2327 + $0xc] sm:$0xf]
          %v2332 = vld [vmem:[%s2327 + $0x10] sm:$0xf]
          %v2333 = vld [vmem:[%s2327 + $0x14] sm:$0xf]
          %v2334 = vld [vmem:[%s2327 + $0x18] sm:$0xf]
          %v2335 = vld [vmem:[%s2327 + $0x1c] sm:$0xf]
          %v2336 = vld [vmem:[%s2327 + $0x20] sm:$0xf]
          %v2337 = vld [vmem:[%s2327 + $0x24] sm:$0xf]
          %v2338 = vld [vmem:[%s2327 + $0x28] sm:$0xf]
          %v2339 = vld [vmem:[%s2327 + $0x2c] sm:$0xf]
          %v2340 = vld [vmem:[%s2327 + $0x30] sm:$0xf]
          %v2341 = vld [vmem:[%s2327 + $0x34] sm:$0xf]
          %v2342 = vld [vmem:[%s2327 + $0x38] sm:$0xf]
          %v2343 = vld [vmem:[%s2327 + $0x3c] sm:$0xf]
          %v2344 = vld [vmem:[%s2327 + $0x40] sm:$0xf]
          %v2345 = vld [vmem:[%s2327 + $0x44] sm:$0xf]
          %v2346 = vld [vmem:[%s2327 + $0x48] sm:$0xf]
          %v2347 = vld [vmem:[%s2327 + $0x4c] sm:$0xf]
          %v2348 = vld [vmem:[%s2327 + $0x50] sm:$0xf]
          %v2349 = vld [vmem:[%s2327 + $0x54] sm:$0xf]
          %v2350 = vld [vmem:[%s2327 + $0x58] sm:$0xf]
          %v2351 = vld [vmem:[%s2327 + $0x5c] sm:$0xf]
          %v2352 = vld [vmem:[%s2327 + $0x60] sm:$0xf]
          %v2353 = vld [vmem:[%s2327 + $0x64] sm:$0xf]
          %v2354 = vld [vmem:[%s2327 + $0x68] sm:$0xf]
          %v2355 = vld [vmem:[%s2327 + $0x6c] sm:$0xf]
          %v2356 = vld [vmem:[%s2327 + $0x70] sm:$0xf]
          %v2357 = vld [vmem:[%s2327 + $0x74] sm:$0xf]
          %v2358 = vld [vmem:[%s2327 + $0x78] sm:$0xf]
          %v2359 = vld [vmem:[%s2327 + $0x7c] sm:$0xf]
          %v2360 = vld [vmem:[%s2327 + $0x80] sm:$0xf]
          %v2361 = vld [vmem:[%s2327 + $0x84] sm:$0xf]
          %v2362 = vld [vmem:[%s2327 + $0x88] sm:$0xf]
          %v2363 = vld [vmem:[%s2327 + $0x8c] sm:$0xf]
          %v2364 = vld [vmem:[%s2327 + $0x90] sm:$0xf]
          %v2365 = vld [vmem:[%s2327 + $0x94] sm:$0xf]
          %v2366 = vld [vmem:[%s2327 + $0x98] sm:$0xf]
          %v2367 = vld [vmem:[%s2327 + $0x9c] sm:$0xf]
          %v2368 = vld [vmem:[%s2327 + $0xa0] sm:$0xf]
          %v2369 = vld [vmem:[%s2327 + $0xa4] sm:$0xf]
          %v2370 = vld [vmem:[%s2327 + $0xa8] sm:$0xf]
          %v2371 = vld [vmem:[%s2327 + $0xac] sm:$0xf]
          %v2372 = vld [vmem:[%s2327 + $0xb0] sm:$0xf]
          %v2373 = vld [vmem:[%s2327 + $0xb4] sm:$0xf]
          %v2374 = vld [vmem:[%s2327 + $0xb8] sm:$0xf]
          %v2375 = vld [vmem:[%s2327 + $0xbc] sm:$0xf]
          %v2408 = vunpack.c.l.b16 %v2295
          %v2409 = vunpack.c.h.b16 %v2295
          %v2410 = vunpack.c.l.b16 %v2296
          %v2411 = vunpack.c.l.b16 %v2297
          %v2412 = vunpack.c.h.b16 %v2297
          %v2413 = vunpack.c.l.b16 %v2298
          %v2414 = vunpack.c.l.b16 %v2299
          %v2415 = vunpack.c.h.b16 %v2299
          %v2416 = vunpack.c.l.b16 %v2300
          %v2417 = vunpack.c.l.b16 %v2301
          %v2418 = vunpack.c.h.b16 %v2301
          %v2419 = vunpack.c.l.b16 %v2302
          %v2420 = vunpack.c.l.b16 %v2303
          %v2421 = vunpack.c.h.b16 %v2303
          %v2422 = vunpack.c.l.b16 %v2304
          %v2423 = vunpack.c.l.b16 %v2305
          %v2424 = vunpack.c.h.b16 %v2305
          %v2425 = vunpack.c.l.b16 %v2306
          %v2426 = vunpack.c.l.b16 %v2307
          %v2427 = vunpack.c.h.b16 %v2307
          %v2428 = vunpack.c.l.b16 %v2308
          %v2429 = vunpack.c.l.b16 %v2309
          %v2430 = vunpack.c.h.b16 %v2309
          %v2431 = vunpack.c.l.b16 %v2310
          %v2432 = vunpack.c.l.b16 %v2311
          %v2433 = vunpack.c.h.b16 %v2311
          %v2434 = vunpack.c.l.b16 %v2312
          %v2435 = vunpack.c.l.b16 %v2313
          %v2436 = vunpack.c.h.b16 %v2313
          %v2437 = vunpack.c.l.b16 %v2314
          %v2438 = vunpack.c.l.b16 %v2315
          %v2439 = vunpack.c.h.b16 %v2315
          %v2440 = vunpack.c.l.b16 %v2316
          %v2441 = vunpack.c.l.b16 %v2317
          %v2442 = vunpack.c.h.b16 %v2317
          %v2443 = vunpack.c.l.b16 %v2318
          %v2444 = vunpack.c.l.b16 %v2319
          %v2445 = vunpack.c.h.b16 %v2319
          %v2446 = vunpack.c.l.b16 %v2320
          %v2447 = vunpack.c.l.b16 %v2321
          %v2448 = vunpack.c.h.b16 %v2321
          %v2449 = vunpack.c.l.b16 %v2322
          %v2450 = vunpack.c.l.b16 %v2323
          %v2451 = vunpack.c.h.b16 %v2323
          %v2452 = vunpack.c.l.b16 %v2324
          %v2453 = vunpack.c.l.b16 %v2325
          %v2454 = vunpack.c.h.b16 %v2325
          %v2455 = vunpack.c.l.b16 %v2326
          %v2456 = vpack.c.b16 %v2411, %v2408
          %v2457 = vpack.c.b16 %v2412, %v2409
          %v2458 = vpack.c.b16 %v2413, %v2410
          %v2459 = vpack.c.b16 %v2417, %v2414
          %v2460 = vpack.c.b16 %v2418, %v2415
          %v2461 = vpack.c.b16 %v2419, %v2416
          %v2462 = vpack.c.b16 %v2423, %v2420
          %v2463 = vpack.c.b16 %v2424, %v2421
          %v2464 = vpack.c.b16 %v2425, %v2422
          %v2465 = vpack.c.b16 %v2429, %v2426
          %v2466 = vpack.c.b16 %v2430, %v2427
          %v2467 = vpack.c.b16 %v2431, %v2428
          %v2468 = vpack.c.b16 %v2435, %v2432
          %v2469 = vpack.c.b16 %v2436, %v2433
          %v2470 = vpack.c.b16 %v2437, %v2434
          %v2471 = vpack.c.b16 %v2441, %v2438
          %v2472 = vpack.c.b16 %v2442, %v2439
          %v2473 = vpack.c.b16 %v2443, %v2440
          %v2474 = vpack.c.b16 %v2447, %v2444
          %v2475 = vpack.c.b16 %v2448, %v2445
          %v2476 = vpack.c.b16 %v2449, %v2446
          %v2477 = vpack.c.b16 %v2453, %v2450
          %v2478 = vpack.c.b16 %v2454, %v2451
          %v2479 = vpack.c.b16 %v2455, %v2452
          %v2552 = vunpack.c.l.b16 %v2328
          %v2553 = vunpack.c.l.b16 %v2329
          %v2554 = vunpack.c.l.b16 %v2330
          %v2555 = vunpack.c.l.b16 %v2331
          %v2556 = vunpack.c.l.b16 %v2332
          %v2557 = vunpack.c.l.b16 %v2333
          %v2558 = vunpack.c.l.b16 %v2334
          %v2559 = vunpack.c.l.b16 %v2335
          %v2560 = vunpack.c.l.b16 %v2336
          %v2561 = vunpack.c.l.b16 %v2337
          %v2562 = vunpack.c.l.b16 %v2338
          %v2563 = vunpack.c.l.b16 %v2339
          %v2564 = vunpack.c.l.b16 %v2340
          %v2565 = vunpack.c.l.b16 %v2341
          %v2566 = vunpack.c.l.b16 %v2342
          %v2567 = vunpack.c.l.b16 %v2343
          %v2568 = vunpack.c.l.b16 %v2344
          %v2569 = vunpack.c.l.b16 %v2345
          %v2570 = vunpack.c.l.b16 %v2346
          %v2571 = vunpack.c.l.b16 %v2347
          %v2572 = vunpack.c.l.b16 %v2348
          %v2573 = vunpack.c.l.b16 %v2349
          %v2574 = vunpack.c.l.b16 %v2350
          %v2575 = vunpack.c.l.b16 %v2351
          %v2576 = vunpack.c.l.b16 %v2352
          %v2577 = vunpack.c.l.b16 %v2353
          %v2578 = vunpack.c.l.b16 %v2354
          %v2579 = vunpack.c.l.b16 %v2355
          %v2580 = vunpack.c.l.b16 %v2356
          %v2581 = vunpack.c.l.b16 %v2357
          %v2582 = vunpack.c.l.b16 %v2358
          %v2583 = vunpack.c.l.b16 %v2359
          %v2584 = vunpack.c.l.b16 %v2360
          %v2585 = vunpack.c.l.b16 %v2361
          %v2586 = vunpack.c.l.b16 %v2362
          %v2587 = vunpack.c.l.b16 %v2363
          %v2588 = vunpack.c.l.b16 %v2364
          %v2589 = vunpack.c.l.b16 %v2365
          %v2590 = vunpack.c.l.b16 %v2366
          %v2591 = vunpack.c.l.b16 %v2367
          %v2592 = vunpack.c.l.b16 %v2368
          %v2593 = vunpack.c.l.b16 %v2369
          %v2594 = vunpack.c.l.b16 %v2370
          %v2595 = vunpack.c.l.b16 %v2371
          %v2596 = vunpack.c.l.b16 %v2372
          %v2597 = vunpack.c.l.b16 %v2373
          %v2598 = vunpack.c.l.b16 %v2374
          %v2599 = vunpack.c.l.b16 %v2375
          %v2600 = vpack.c.b16 %v2553, %v2552
          %v2601 = vpack.c.b16 %v2555, %v2554
          %v2602 = vpack.c.b16 %v2557, %v2556
          %v2603 = vpack.c.b16 %v2559, %v2558
          %v2604 = vpack.c.b16 %v2561, %v2560
          %v2605 = vpack.c.b16 %v2563, %v2562
          %v2606 = vpack.c.b16 %v2565, %v2564
          %v2607 = vpack.c.b16 %v2567, %v2566
          %v2608 = vpack.c.b16 %v2569, %v2568
          %v2609 = vpack.c.b16 %v2571, %v2570
          %v2610 = vpack.c.b16 %v2573, %v2572
          %v2611 = vpack.c.b16 %v2575, %v2574
          %v2612 = vpack.c.b16 %v2577, %v2576
          %v2613 = vpack.c.b16 %v2579, %v2578
          %v2614 = vpack.c.b16 %v2581, %v2580
          %v2615 = vpack.c.b16 %v2583, %v2582
          %v2616 = vpack.c.b16 %v2585, %v2584
          %v2617 = vpack.c.b16 %v2587, %v2586
          %v2618 = vpack.c.b16 %v2589, %v2588
          %v2619 = vpack.c.b16 %v2591, %v2590
          %v2620 = vpack.c.b16 %v2593, %v2592
          %v2621 = vpack.c.b16 %v2595, %v2594
          %v2622 = vpack.c.b16 %v2597, %v2596
          %v2623 = vpack.c.b16 %v2599, %v2598
          %2648 = vmatprep.subr.bf16.mxu0 0
          %2649 = vmatpush1.bf16.msra.mxu0 %v2607
          %2650 = vmatprep.subr.bf16.mxu0 0
          %2651 = vmatpush1.bf16.msra.mxu0 %v2606
          %2652 = vmatprep.subr.bf16.mxu0 0
          %2653 = vmatpush1.bf16.msra.mxu0 %v2605
          %2654 = vmatprep.subr.bf16.mxu0 0
          %2655 = vmatpush1.bf16.msra.mxu0 %v2604
          %2656 = vmatprep.subr.bf16.mxu0 0
          %2657 = vmatpush1.bf16.msra.mxu0 %v2603
          %2658 = vmatprep.subr.bf16.mxu0 0
          %2659 = vmatpush1.bf16.msra.mxu0 %v2602
          %2660 = vmatprep.subr.bf16.mxu0 0
          %2661 = vmatpush1.bf16.msra.mxu0 %v2601
          %2662 = vmatprep.subr.bf16.mxu0 0
          %2663 = vmatpush1.bf16.msra.mxu0 %v2600
          %2664 = vmatprep.subr.bf16.mxu0 0
          %2665 = vmatpush2.bf16.msra.mxu0 %v2615
          %2666 = vmatprep.subr.bf16.mxu0 0
          %2667 = vmatpush2.bf16.msra.mxu0 %v2614
          %2668 = vmatprep.subr.bf16.mxu0 0
          %2669 = vmatpush2.bf16.msra.mxu0 %v2613
          %2670 = vmatprep.subr.bf16.mxu0 0
          %2671 = vmatpush2.bf16.msra.mxu0 %v2612
          %2672 = vmatprep.subr.bf16.mxu0 0
          %2673 = vmatpush2.bf16.msra.mxu0 %v2611
          %2674 = vmatprep.subr.bf16.mxu0 0
          %2675 = vmatpush2.bf16.msra.mxu0 %v2610
          %2676 = vmatprep.subr.bf16.mxu0 0
          %2677 = vmatpush2.bf16.msra.mxu0 %v2609
          %2678 = vmatprep.subr.bf16.mxu0 0
          %2679 = vmatpush2.bf16.msra.mxu0 %v2608
          %2680 = vmatprep.mubr.bf16.mxu0 %v2457
          %2681 = vmatmul.mubr.bf16.gmra.mxu0 %v2456
          %v2682 = vpop.f32.mrf.mxu0
          %v2683 = vadd.f32 0.0, %v2682
          %v2684 = vpop.f32.mrf.mxu0
          %v2685 = vpop.f32.mrf.mxu0
          %v2686 = vadd.f32 0.0, %v2685
          %v2687 = vpop.f32.mrf.mxu0
          %2688 = vmatprep.mubr.bf16.mxu0 %v2460
          %2689 = vmatmul.mubr.bf16.gmra.mxu0 %v2459
          %v2690 = vpop.f32.mrf.mxu0
          %v2691 = vadd.f32 0.0, %v2690
          %v2692 = vpop.f32.mrf.mxu0
          %v2693 = vpop.f32.mrf.mxu0
          %v2694 = vadd.f32 0.0, %v2693
          %v2695 = vpop.f32.mrf.mxu0
          %2696 = vmatprep.mubr.bf16.mxu0 %v2463
          %2697 = vmatmul.mubr.bf16.gmra.mxu0 %v2462
          %v2698 = vpop.f32.mrf.mxu0
          %v2699 = vadd.f32 0.0, %v2698
          %v2700 = vpop.f32.mrf.mxu0
          %v2701 = vpop.f32.mrf.mxu0
          %v2702 = vadd.f32 0.0, %v2701
          %v2703 = vpop.f32.mrf.mxu0
          %2704 = vmatprep.mubr.bf16.mxu0 %v2466
          %2705 = vmatmul.mubr.bf16.gmra.mxu0 %v2465
          %v2706 = vpop.f32.mrf.mxu0
          %v2707 = vadd.f32 0.0, %v2706
          %v2708 = vpop.f32.mrf.mxu0
          %v2709 = vpop.f32.mrf.mxu0
          %v2710 = vadd.f32 0.0, %v2709
          %v2711 = vpop.f32.mrf.mxu0
          %2712 = vmatprep.mubr.bf16.mxu0 %v2469
          %2713 = vmatmul.mubr.bf16.gmra.mxu0 %v2468
          %v2714 = vpop.f32.mrf.mxu0
          %v2715 = vadd.f32 0.0, %v2714
          %v2716 = vpop.f32.mrf.mxu0
          %v2717 = vpop.f32.mrf.mxu0
          %v2718 = vadd.f32 0.0, %v2717
          %v2719 = vpop.f32.mrf.mxu0
          %2720 = vmatprep.mubr.bf16.mxu0 %v2472
          %2721 = vmatmul.mubr.bf16.gmra.mxu0 %v2471
          %v2722 = vpop.f32.mrf.mxu0
          %v2723 = vadd.f32 0.0, %v2722
          %v2724 = vpop.f32.mrf.mxu0
          %v2725 = vpop.f32.mrf.mxu0
          %v2726 = vadd.f32 0.0, %v2725
          %v2727 = vpop.f32.mrf.mxu0
          %2728 = vmatprep.mubr.bf16.mxu0 %v2475
          %2729 = vmatmul.mubr.bf16.gmra.mxu0 %v2474
          %v2730 = vpop.f32.mrf.mxu0
          %v2731 = vadd.f32 0.0, %v2730
          %v2732 = vpop.f32.mrf.mxu0
          %v2733 = vpop.f32.mrf.mxu0
          %v2734 = vadd.f32 0.0, %v2733
          %v2735 = vpop.f32.mrf.mxu0
          %2736 = vmatprep.mubr.bf16.mxu0 %v2478
          %2737 = vmatmul.mubr.bf16.gmra.mxu0 %v2477
          %v2738 = vpop.f32.mrf.mxu0
          %v2739 = vadd.f32 0.0, %v2738
          %v2740 = vpop.f32.mrf.mxu0
          %v2741 = vpop.f32.mrf.mxu0
          %v2742 = vadd.f32 0.0, %v2741
          %v2743 = vpop.f32.mrf.mxu0
          %2744 = vdwg.mxu0
          %2745 = vmatprep.subr.bf16.mxu0 0
          %2746 = vmatpush1.bf16.msra.mxu0 %v2623
          %2747 = vmatprep.subr.bf16.mxu0 0
          %2748 = vmatpush1.bf16.msra.mxu0 %v2622
          %2749 = vmatprep.subr.bf16.mxu0 0
          %2750 = vmatpush1.bf16.msra.mxu0 %v2621
          %2751 = vmatprep.subr.bf16.mxu0 0
          %2752 = vmatpush1.bf16.msra.mxu0 %v2620
          %2753 = vmatprep.subr.bf16.mxu0 0
          %2754 = vmatpush1.bf16.msra.mxu0 %v2619
          %2755 = vmatprep.subr.bf16.mxu0 0
          %2756 = vmatpush1.bf16.msra.mxu0 %v2618
          %2757 = vmatprep.subr.bf16.mxu0 0
          %2758 = vmatpush1.bf16.msra.mxu0 %v2617
          %2759 = vmatprep.subr.bf16.mxu0 0
          %2760 = vmatpush1.bf16.msra.mxu0 %v2616
          %2761 = vmatprep.subr.bf16.mxu0 0
          %2762 = vmatpush2.bf16.msra.mxu0 0
          %2763 = vmatprep.subr.bf16.mxu0 0
          %2764 = vmatpush2.bf16.msra.mxu0 0
          %2765 = vmatprep.subr.bf16.mxu0 0
          %2766 = vmatpush2.bf16.msra.mxu0 0
          %2767 = vmatprep.subr.bf16.mxu0 0
          %2768 = vmatpush2.bf16.msra.mxu0 0
          %2769 = vmatprep.subr.bf16.mxu0 0
          %2770 = vmatpush2.bf16.msra.mxu0 0
          %2771 = vmatprep.subr.bf16.mxu0 0
          %2772 = vmatpush2.bf16.msra.mxu0 0
          %2773 = vmatprep.subr.bf16.mxu0 0
          %2774 = vmatpush2.bf16.msra.mxu0 0
          %2775 = vmatprep.subr.bf16.mxu0 0
          %2776 = vmatpush2.bf16.msra.mxu0 0
          %2777 = vmatprep.mubr.bf16.mxu0 0
          %2778 = vmatmul.mubr.bf16.gmra.mxu0 %v2458
          %v2779 = vpop.f32.mrf.mxu0
          %v2780 = vadd.f32 %v2683, %v2779
          %v2781 = vpop.f32.mrf.mxu0
          %v2782 = vpop.f32.mrf.mxu0
          %v2783 = vadd.f32 %v2686, %v2782
          %v2784 = vpop.f32.mrf.mxu0
          %2785 = vmatprep.mubr.bf16.mxu0 0
          %2786 = vmatmul.mubr.bf16.gmra.mxu0 %v2461
          %v2787 = vpop.f32.mrf.mxu0
          %v2788 = vadd.f32 %v2691, %v2787
          %v2789 = vpop.f32.mrf.mxu0
          %v2790 = vpop.f32.mrf.mxu0
          %v2791 = vadd.f32 %v2694, %v2790
          %v2792 = vpop.f32.mrf.mxu0
          %2793 = vmatprep.mubr.bf16.mxu0 0
          %2794 = vmatmul.mubr.bf16.gmra.mxu0 %v2464
          %v2795 = vpop.f32.mrf.mxu0
          %v2796 = vadd.f32 %v2699, %v2795
          %v2797 = vpop.f32.mrf.mxu0
          %v2798 = vpop.f32.mrf.mxu0
          %v2799 = vadd.f32 %v2702, %v2798
          %v2800 = vpop.f32.mrf.mxu0
          %2801 = vmatprep.mubr.bf16.mxu0 0
          %2802 = vmatmul.mubr.bf16.gmra.mxu0 %v2467
          %v2803 = vpop.f32.mrf.mxu0
          %v2804 = vadd.f32 %v2707, %v2803
          %v2805 = vpop.f32.mrf.mxu0
          %v2806 = vpop.f32.mrf.mxu0
          %v2807 = vadd.f32 %v2710, %v2806
          %v2808 = vpop.f32.mrf.mxu0
          %2809 = vmatprep.mubr.bf16.mxu0 0
          %2810 = vmatmul.mubr.bf16.gmra.mxu0 %v2470
          %v2811 = vpop.f32.mrf.mxu0
          %v2812 = vadd.f32 %v2715, %v2811
          %v2813 = vpop.f32.mrf.mxu0
          %v2814 = vpop.f32.mrf.mxu0
          %v2815 = vadd.f32 %v2718, %v2814
          %v2816 = vpop.f32.mrf.mxu0
          %2817 = vmatprep.mubr.bf16.mxu0 0
          %2818 = vmatmul.mubr.bf16.gmra.mxu0 %v2473
          %v2819 = vpop.f32.mrf.mxu0
          %v2820 = vadd.f32 %v2723, %v2819
          %v2821 = vpop.f32.mrf.mxu0
          %v2822 = vpop.f32.mrf.mxu0
          %v2823 = vadd.f32 %v2726, %v2822
          %v2824 = vpop.f32.mrf.mxu0
          %2825 = vmatprep.mubr.bf16.mxu0 0
          %2826 = vmatmul.mubr.bf16.gmra.mxu0 %v2476
          %v2827 = vpop.f32.mrf.mxu0
          %v2828 = vadd.f32 %v2731, %v2827
          %v2829 = vpop.f32.mrf.mxu0
          %v2830 = vpop.f32.mrf.mxu0
          %v2831 = vadd.f32 %v2734, %v2830
          %v2832 = vpop.f32.mrf.mxu0
          %2833 = vmatprep.mubr.bf16.mxu0 0
          %2834 = vmatmul.mubr.bf16.gmra.mxu0 %v2479
          %v2835 = vpop.f32.mrf.mxu0
          %v2836 = vadd.f32 %v2739, %v2835
          %v2837 = vpop.f32.mrf.mxu0
          %v2838 = vpop.f32.mrf.mxu0
          %v2839 = vadd.f32 %v2742, %v2838
          %v2840 = vpop.f32.mrf.mxu0
          %2841 = vdwg.mxu0
          %v2842 = vadd.f32 %v2229, %v2780
          %v2843 = vadd.f32 %v2232, %v2783
          %v2844 = vadd.f32 %v2237, %v2788
          %v2845 = vadd.f32 %v2240, %v2791
          %v2846 = vadd.f32 %v2245, %v2796
          %v2847 = vadd.f32 %v2248, %v2799
          %v2848 = vadd.f32 %v2253, %v2804
          %v2849 = vadd.f32 %v2256, %v2807
          %v2850 = vadd.f32 %v2261, %v2812
          %v2851 = vadd.f32 %v2264, %v2815
          %v2852 = vadd.f32 %v2269, %v2820
          %v2853 = vadd.f32 %v2272, %v2823
          %v2854 = vadd.f32 %v2277, %v2828
          %v2855 = vadd.f32 %v2280, %v2831
          %v2856 = vadd.f32 %v2285, %v2836
          %v2857 = vadd.f32 %v2288, %v2839
          %v2858 = vlaneseq
          %v2859 = vshrl.u32 %v2858, 7
          %v2860 = vsub.s32 4, %v2859
          %v2861 = vrot.slane %v259, %v2860
          %v2862 = vmul.f32 %v2842, %v2861
          %v2863 = vmul.f32 %v2843, %v2861
          %v2864 = vmul.f32 %v2844, %v2861
          %v2865 = vmul.f32 %v2845, %v2861
          %v2866 = vmul.f32 %v2846, %v2861
          %v2867 = vmul.f32 %v2847, %v2861
          %v2868 = vmul.f32 %v2848, %v2861
          %v2869 = vmul.f32 %v2849, %v2861
          %v2870 = vmul.f32 %v2850, %v2861
          %v2871 = vmul.f32 %v2851, %v2861
          %v2872 = vmul.f32 %v2852, %v2861
          %v2873 = vmul.f32 %v2853, %v2861
          %v2874 = vmul.f32 %v2854, %v2861
          %v2875 = vmul.f32 %v2855, %v2861
          %v2876 = vmul.f32 %v2856, %v2861
          %v2877 = vmul.f32 %v2857, %v2861
          %v2878 = vlaneseq
          %v2879 = vshrl.u32 %v2878, 7
          %v2880 = vsub.s32 5, %v2879
          %v2881 = vrot.slane %v259, %v2880
          %v2882 = vadd.f32 %v2862, %v2881
          %v2883 = vadd.f32 %v2863, %v2881
          %v2884 = vadd.f32 %v2864, %v2881
          %v2885 = vadd.f32 %v2865, %v2881
          %v2886 = vadd.f32 %v2866, %v2881
          %v2887 = vadd.f32 %v2867, %v2881
          %v2888 = vadd.f32 %v2868, %v2881
          %v2889 = vadd.f32 %v2869, %v2881
          %v2890 = vadd.f32 %v2870, %v2881
          %v2891 = vadd.f32 %v2871, %v2881
          %v2892 = vadd.f32 %v2872, %v2881
          %v2893 = vadd.f32 %v2873, %v2881
          %v2894 = vadd.f32 %v2874, %v2881
          %v2895 = vadd.f32 %v2875, %v2881
          %v2896 = vadd.f32 %v2876, %v2881
          %v2897 = vadd.f32 %v2877, %v2881
          %s2898 = smul.u32 %s1190, 16
          %s2899 = scalar_lea.vmem %s257, %s2898 [#allocation11]
          %2900 = vst [vmem:[%s2899] sm:$0xff] %v2882
          %2901 = vst [vmem:[%s2899 + $0x8] sm:$0xff] %v2883
          %2902 = vst [vmem:[%s2899 + $0x10] sm:$0xff] %v2884
          %2903 = vst [vmem:[%s2899 + $0x18] sm:$0xff] %v2885
          %2904 = vst [vmem:[%s2899 + $0x20] sm:$0xff] %v2886
          %2905 = vst [vmem:[%s2899 + $0x28] sm:$0xff] %v2887
          %2906 = vst [vmem:[%s2899 + $0x30] sm:$0xff] %v2888
          %2907 = vst [vmem:[%s2899 + $0x38] sm:$0xff] %v2889
          %2908 = vst [vmem:[%s2899 + $0x40] sm:$0xff] %v2890
          %2909 = vst [vmem:[%s2899 + $0x48] sm:$0xff] %v2891
          %2910 = vst [vmem:[%s2899 + $0x50] sm:$0xff] %v2892
          %2911 = vst [vmem:[%s2899 + $0x58] sm:$0xff] %v2893
          %2912 = vst [vmem:[%s2899 + $0x60] sm:$0xff] %v2894
          %2913 = vst [vmem:[%s2899 + $0x68] sm:$0xff] %v2895
          %2914 = vst [vmem:[%s2899 + $0x70] sm:$0xff] %v2896
          %2915 = vst [vmem:[%s2899 + $0x78] sm:$0xff] %v2897
        $region61: #{tpu_custom_call.1} parent=35 // loop_footer
          %s1189 = sadd.s32 1, %s1185
        $region62: #{tpu_custom_call.1} parent=35 // loop_footer_branch
          %1184 = sbr.rel target = $region58
        $region63: #{tpu_custom_call.1} parent=35 // loop_exit
          _
        %s2916 = sand.u32 %s120, 1
        %s2917 = scalar_lea.sflag [#allocation5], %s2916
        %s2918 = sand.u32 %s120, 1
        %s2919 = smul.addr %s2918, 256
        %s2920 = scalar_lea.vmem [#allocation11], %s2919
        // Predicated region
        $region64: #{tpu_custom_call.1} parent=35 // pred_check
          %p2921 = pneg %p130
        $region65: #{tpu_custom_call.1} parent=35 // pred_check_branch
          %2923 = sbr.rel (%p2921) target = $region67
        $region66: #{tpu_custom_call.1} parent=35 // pred_region
          %s2925 = ssub.s32 4096, 4096
          %2926 = vsyncadd %s2917, %s2925
          %s2927 = smul.addr %s23, 32
          %s2928 = smul.addr %s2927, 128
          %s2929 = scalar_lea.hbm %s4, %s2928
          %s2930 = sshll.u32 %s2920, 4
          %s2931 = int_to_ptr.vmem [resolvable:$true] %s2930
          %2936 = dma.vmem_to_hbm [thread:$0]  %s2931, 4096, %s2929, %s2917, 128, 128, 8
        $region67: #{tpu_custom_call.1} parent=35 // pred_fallthru
          _
      $region36: #{tpu_custom_call.1} parent=5 // pred_fallthru
        _
      %p2937 = scmp.le.s32.totalorder 2, %s18
      // Predicated region
      $region68: #{tpu_custom_call.1} parent=5 // pred_check
        %p2938 = pneg %p2937
      $region69: #{tpu_custom_call.1} parent=5 // pred_check_branch
        %2940 = sbr.rel (%p2938) target = $region71
      $region70: #{tpu_custom_call.1} parent=5 // pred_region
        %s2941 = ssub.s32 %s18, 2
        // Predicated region
        $region72: #{tpu_custom_call.1} parent=70 // pred_check
          %p2942 = pneg %p136
        $region73: #{tpu_custom_call.1} parent=70 // pred_check_branch
          %2944 = sbr.rel (%p2942) target = $region75
        $region74: #{tpu_custom_call.1} parent=70 // pred_region
          %s2945 = sand.u32 %s121, 1
          %s2946 = scalar_lea.sflag [#allocation5], %s2945
          %s2947 = sand.u32 %s121, 1
          %s2948 = smul.addr %s2947, 256
          %s2949 = scalar_lea.vmem [#allocation11], %s2948
          %2950 = dma.done %s2946, 4096
        $region75: #{tpu_custom_call.1} parent=70 // pred_fallthru
          _
      $region71: #{tpu_custom_call.1} parent=5 // pred_fallthru
        _
    $region6: #{tpu_custom_call.1} parent=1 // loop_footer
      %s22 = sadd.s32 1, %s18
    $region7: #{tpu_custom_call.1} parent=1 // loop_footer_branch
      %17 = sbr.rel target = $region3
    $region8: #{tpu_custom_call.1} parent=1 // loop_exit
      _
    %2951 = vsyncpa [#allocation4], 1
    %s2952 = scalar_lea.sflag [#allocation4], 1
    %2953 = vsyncpa %s2952, 1
    %2954 = vsyncpa [#allocation7], 1
    %2955 = vsyncpa [#allocation10], 1
    %2956 = vsyncpa [#allocation5], 1
    %s2957 = scalar_lea.sflag [#allocation5], 1
    %2958 = vsyncpa %s2957, 1

</llo_original>
